<compile_context>
chip_gen: v6e
topology: v6e:2x2x1
jax: 0.10.0
libtpu: 0.0.40
codegen_flags: <defaults>
</compile_context>

<pallas_src>
import jax
import jax.numpy as jnp
from jax import lax
from jax.experimental import pallas as pl
from jax.experimental.pallas import tpu as pltpu


# ---------------------------------------------------------------------------
# Fused multi-layer GatedGCN kernel (grid axis = layer index)
# ---------------------------------------------------------------------------
def fused_gcn_kernel(h_in_ref, e_in_ref, srcc_ref, dstc_ref, srcr_ref, dstr_ref,
                     wh_ref, bh_ref, we_ref, be_ref,
                     gh_ref, bhn_ref, ge_ref, ben_ref,
                     h_out_ref, e_out_ref,
                     s_src_ref, s_dst_ref, st_src_ref, st_dst_ref):
    layer = pl.program_id(0)
    N, F = h_out_ref.shape
    E = e_out_ref.shape[0]

    # Layer 0: seed the VMEM-resident carries and build the bf16 one-hot
    # selection matrices once; they persist in scratch for all layers.
    @pl.when(layer == 0)
    def _():
        h_out_ref[...] = h_in_ref[...]
        e_out_ref[...] = e_in_ref[...]
        col = lax.broadcasted_iota(jnp.int32, (E, N), 1)
        row = lax.broadcasted_iota(jnp.int32, (N, E), 0)
        one = jnp.float32(1.0)
        zero = jnp.float32(0.0)
        s_src_ref[...] = jnp.where(col == srcc_ref[...], one, zero).astype(jnp.bfloat16)
        s_dst_ref[...] = jnp.where(col == dstc_ref[...], one, zero).astype(jnp.bfloat16)
        st_src_ref[...] = jnp.where(row == srcr_ref[...], one, zero).astype(jnp.bfloat16)
        st_dst_ref[...] = jnp.where(row == dstr_ref[...], one, zero).astype(jnp.bfloat16)

    h = h_out_ref[...]        # (N, F) f32 carry from previous layer
    e = e_out_ref[...]        # (E, F) f32 carry from previous layer

    # ---- fused linear layers on the MXU (bf16 in, f32 accumulate) ----------
    # hx column order: [A1 | A2 | B2 | B3 | A3]
    hx = jnp.dot(h.astype(jnp.bfloat16), wh_ref[...],
                 preferred_element_type=jnp.float32) + bh_ref[...]          # (N, 5F)
    b1h = jnp.dot(e.astype(jnp.bfloat16), we_ref[...],
                  preferred_element_type=jnp.float32) + be_ref[...]         # (E, F)

    # ---- gathers as (E,N)@(N,3F) matmuls with concatenated payloads --------
    gsrc_rhs = hx[:, F:4 * F].astype(jnp.bfloat16)       # [A2 | B2 | B3]
    gdst_rhs = hx[:, 2 * F:5 * F].astype(jnp.bfloat16)   # [B2 | B3 | A3]
    g_src = jnp.dot(s_src_ref[...], gsrc_rhs,
                    preferred_element_type=jnp.float32)  # (E,3F) = [A2,B2,B3][src]
    g_dst = jnp.dot(s_dst_ref[...], gdst_rhs,
                    preferred_element_type=jnp.float32)  # (E,3F) = [B2,B3,A3][dst]

    a1h = hx[:, 0:F]
    a2h_src = g_src[:, 0:F]
    b2h_src = g_src[:, F:2 * F]
    b3h_src = g_src[:, 2 * F:3 * F]
    b2h_dst = g_dst[:, 0:F]
    b3h_dst = g_dst[:, F:2 * F]
    a3h_dst = g_dst[:, 2 * F:3 * F]

    def layer_norm(x, g, b):
        mu = jnp.mean(x, axis=-1, keepdims=True)
        var = jnp.mean(jnp.square(x - mu), axis=-1, keepdims=True)
        return (x - mu) * lax.rsqrt(var + 1e-5) * g + b

    g_e = ge_ref[...]
    b_e = ben_ref[...]
    e_fw = e + jnp.maximum(layer_norm(b1h + b2h_src + b3h_dst, g_e, b_e), 0.0)
    e_bw = e + jnp.maximum(layer_norm(b1h + b2h_dst + b3h_src, g_e, b_e), 0.0)

    sig_fw = jax.nn.sigmoid(e_fw)
    sig_bw = jax.nn.sigmoid(e_bw)

    # ---- scatter-add (segment sum) as (N,E)@(E,2F) matmuls, payload=[msg|gate]
    pay_fw = jnp.concatenate([a2h_src * sig_fw, sig_fw], axis=-1).astype(jnp.bfloat16)
    pay_bw = jnp.concatenate([a3h_dst * sig_bw, sig_bw], axis=-1).astype(jnp.bfloat16)
    scat_fw = jnp.dot(st_dst_ref[...], pay_fw, preferred_element_type=jnp.float32)  # (N,2F)
    scat_bw = jnp.dot(st_src_ref[...], pay_bw, preferred_element_type=jnp.float32)  # (N,2F)

    h_fw = scat_fw[:, 0:F] * pl.reciprocal(scat_fw[:, F:2 * F] + 1e-6, approx=True)
    h_bw = scat_bw[:, 0:F] * pl.reciprocal(scat_bw[:, F:2 * F] + 1e-6, approx=True)

    h_new = jnp.maximum(layer_norm(a1h + h_fw + h_bw, gh_ref[...], bhn_ref[...]), 0.0)

    h_out_ref[...] = h + h_new
    e_out_ref[...] = e_fw


# ---------------------------------------------------------------------------
# Wrapper
# ---------------------------------------------------------------------------
def _vmem_limit_bytes(N, E, F, L):
    del L
    f32, bf16, i32 = 4, 2, 4
    carries = 4 * (N * F + E * F) * f32                    # h/e in + resident out
    idx = 4 * (2 * E) * i32                                # (E,1)+(1,E) indices, dbl-buf
    weights = 2 * (F * 5 * F * bf16 + 5 * F * f32
                   + F * F * bf16 + F * f32 + 4 * F * f32)  # per-layer block, dbl-buf
    onehots = 2 * (E * N + N * E) * bf16
    inter = (N * 5 * F + 2 * E * 3 * F + 8 * E * F + 4 * N * F) * f32
    est = carries + idx + weights + onehots + inter
    return int(min(max(4 * est, 16 * 1024 * 1024), 48 * 1024 * 1024))


def layered_gated_gcn_pallas(h, edge_attr, src, dst, packed):
    wh, bh, we, be, g_h, b_h, g_e, b_e = packed
    N, F = h.shape
    E = edge_attr.shape[0]
    L = wh.shape[0]

    srcc = src.reshape(E, 1).astype(jnp.int32)
    dstc = dst.reshape(E, 1).astype(jnp.int32)
    srcr = src.reshape(1, E).astype(jnp.int32)
    dstr = dst.reshape(1, E).astype(jnp.int32)

    shared = lambda shape: pl.BlockSpec(shape, lambda l: (0, 0))
    per_layer = lambda shape: pl.BlockSpec((None,) + shape, lambda l: (l, 0, 0))

    grid_spec = pltpu.PrefetchScalarGridSpec(
        num_scalar_prefetch=0,
        grid=(L,),
        in_specs=[
            shared((N, F)), shared((E, F)),                 # h_in, e_in
            shared((E, 1)), shared((E, 1)),                 # src/dst column form
            shared((1, E)), shared((1, E)),                 # src/dst row form
            per_layer((F, 5 * F)), per_layer((1, 5 * F)),   # fused h-linear W/b
            per_layer((F, F)), per_layer((1, F)),           # B1 W/b
            per_layer((1, F)), per_layer((1, F)),           # ln_h gamma/beta
            per_layer((1, F)), per_layer((1, F)),           # ln_e gamma/beta
        ],
        out_specs=(shared((N, F)), shared((E, F))),
        scratch_shapes=[
            pltpu.VMEM((E, N), jnp.bfloat16),   # s_src   (gather, edge-major)
            pltpu.VMEM((E, N), jnp.bfloat16),   # s_dst
            pltpu.VMEM((N, E), jnp.bfloat16),   # s_src^T (scatter, node-major)
            pltpu.VMEM((N, E), jnp.bfloat16),   # s_dst^T
        ],
    )

    return pl.pallas_call(
        fused_gcn_kernel,
        out_shape=(jax.ShapeDtypeStruct((N, F), jnp.float32),
                   jax.ShapeDtypeStruct((E, F), jnp.float32)),
        grid_spec=grid_spec,
        compiler_params=pltpu.CompilerParams(
            dimension_semantics=("arbitrary",),
            vmem_limit_bytes=_vmem_limit_bytes(N, E, F, L)),
    )(h, edge_attr, srcc, dstc, srcr, dstr, wh, bh, we, be, g_h, b_h, g_e, b_e)


layered_gated_gcn = jax.jit(layered_gated_gcn_pallas)


def pack_params(layer_params):
    """Stack per-layer params and fuse the 5 h-input linears into one matrix."""
    wh, bh, we, be, g_h, b_h, g_e, b_e = [], [], [], [], [], [], [], []
    for p in layer_params:
        (wa1, ba1, wa2, ba2, wa3, ba3, wb1, bb1, wb2, bb2, wb3, bb3,
         ln_gh, ln_bh, ln_ge, ln_be) = p
        # fused column order: [A1 | A2 | B2 | B3 | A3]
        wh.append(jnp.concatenate([wa1, wa2, wb2, wb3, wa3], axis=1))
        bh.append(jnp.concatenate([ba1, ba2, bb2, bb3, ba3], axis=1))
        we.append(wb1)
        be.append(bb1)
        g_h.append(ln_gh); b_h.append(ln_bh); g_e.append(ln_ge); b_e.append(ln_be)
    return (jnp.stack(wh).astype(jnp.bfloat16),   # (L, F, 5F) bf16
            jnp.stack(bh),                        # (L, 1, 5F) f32
            jnp.stack(we).astype(jnp.bfloat16),   # (L, F, F)  bf16
            jnp.stack(be),                        # (L, 1, F)  f32
            jnp.stack(g_h), jnp.stack(b_h),       # ln_h gamma/beta (L,1,F)
            jnp.stack(g_e), jnp.stack(b_e))       # ln_e gamma/beta (L,1,F)


# ---------------------------------------------------------------------------
# Pure-JAX reference (for correctness check)
# ---------------------------------------------------------------------------
def ref_layer(h, e, src, dst, params):
    (wa1, ba1, wa2, ba2, wa3, ba3, wb1, bb1, wb2, bb2, wb3, bb3,
     gh, bh, ge, be) = params
    N = h.shape[0]

    def lin(x, w, b):
        return x @ w + b[0]

    def layer_norm(x, g, b):
        mu = jnp.mean(x, axis=-1, keepdims=True)
        var = jnp.mean((x - mu) ** 2, axis=-1, keepdims=True)
        return (x - mu) / jnp.sqrt(var + 1e-5) * g[0] + b[0]

    A1h, A2h, A3h = lin(h, wa1, ba1), lin(h, wa2, ba2), lin(h, wa3, ba3)
    B1h, B2h, B3h = lin(e, wb1, bb1), lin(h, wb2, bb2), lin(h, wb3, bb3)

    e_fw = e + jax.nn.relu(layer_norm(B1h + B2h[src] + B3h[dst], ge, be))
    e_bw = e + jax.nn.relu(layer_norm(B1h + B2h[dst] + B3h[src], ge, be))

    sig_fw = jax.nn.sigmoid(e_fw)
    sig_bw = jax.nn.sigmoid(e_bw)

    seg = lambda m, idx: jax.ops.segment_sum(m, idx, num_segments=N)
    h_fw = seg(A2h[src] * sig_fw, dst) / (seg(sig_fw, dst) + 1e-6)
    h_bw = seg(A3h[dst] * sig_bw, src) / (seg(sig_bw, src) + 1e-6)

    h_new = jax.nn.relu(layer_norm(A1h + h_fw + h_bw, gh, bh))
    return h + h_new, e_fw


def ref_model(h, e, src, dst, layer_params):
    for p in layer_params:
        h, e = ref_layer(h, e, src, dst, p)
    return h, e


# ---------------------------------------------------------------------------
# Deterministic parameter / input construction
# ---------------------------------------------------------------------------
def init_layer_params(key, hidden):
    ks = jax.random.split(key, 12)
    bound = 1.0 / jnp.sqrt(hidden)
    params = []
    for i in range(6):  # A1, A2, A3, B1, B2, B3 (weights pre-transposed to (in, out))
        w = jax.random.uniform(ks[2 * i], (hidden, hidden), jnp.float32, -bound, bound)
        b = jax.random.uniform(ks[2 * i + 1], (1, hidden), jnp.float32, -bound, bound)
        params += [w, b]
    # LayerNorm params: ln_h then ln_e (gamma=1, beta=0 as PyTorch default)
    params += [jnp.ones((1, hidden), jnp.float32), jnp.zeros((1, hidden), jnp.float32),
               jnp.ones((1, hidden), jnp.float32), jnp.zeros((1, hidden), jnp.float32)]
    return tuple(params)


if __name__ == "__main__":
    num_layers = 2
    hidden = 32      # hidden_features
    N = 16           # number of nodes
    E = 48           # number of edges

    key = jax.random.PRNGKey(0)
    k_h, k_e, k_src, k_dst, k_p = jax.random.split(key, 5)

    h = jax.random.normal(k_h, (N, hidden), jnp.float32)
    edge_attr = jax.random.normal(k_e, (E, hidden), jnp.float32)
    src = jax.random.randint(k_src, (E,), 0, N, jnp.int32)
    dst = jax.random.randint(k_dst, (E,), 0, N, jnp.int32)

    layer_params = tuple(init_layer_params(k, hidden)
                         for k in jax.random.split(k_p, num_layers))
    packed = pack_params(layer_params)

    h_out, e_out = layered_gated_gcn(h, edge_attr, src, dst, packed)
    jax.block_until_ready((h_out, e_out))

    h_ref, e_ref = ref_model(h, edge_attr, src, dst, layer_params)
    assert jnp.allclose(h_out, h_ref, rtol=5e-2, atol=5e-2), "node feature mismatch"
    assert jnp.allclose(e_out, e_ref, rtol=5e-2, atol=5e-2), "edge feature mismatch"

    print("KERNEL_OK")
</pallas_src>

<mosaic_0001>
module attributes {stable_mosaic.version = 11 : i64} {
  func.func @fused_gcn_kernel(%arg0: i32, %arg1: memref<16x32xf32, #tpu.memory_space<vmem>>, %arg2: memref<48x32xf32, #tpu.memory_space<vmem>>, %arg3: memref<48x1xi32, #tpu.memory_space<vmem>>, %arg4: memref<48x1xi32, #tpu.memory_space<vmem>>, %arg5: memref<1x48xi32, #tpu.memory_space<vmem>>, %arg6: memref<1x48xi32, #tpu.memory_space<vmem>>, %arg7: memref<1x32x160xbf16, #tpu.memory_space<vmem>>, %arg8: memref<1x1x160xf32, #tpu.memory_space<vmem>>, %arg9: memref<1x32x32xbf16, #tpu.memory_space<vmem>>, %arg10: memref<1x1x32xf32, #tpu.memory_space<vmem>>, %arg11: memref<1x1x32xf32, #tpu.memory_space<vmem>>, %arg12: memref<1x1x32xf32, #tpu.memory_space<vmem>>, %arg13: memref<1x1x32xf32, #tpu.memory_space<vmem>>, %arg14: memref<1x1x32xf32, #tpu.memory_space<vmem>>, %arg15: memref<16x32xf32, #tpu.memory_space<vmem>>, %arg16: memref<48x32xf32, #tpu.memory_space<vmem>>, %arg17: memref<48x16xbf16, #tpu.memory_space<vmem>>, %arg18: memref<48x16xbf16, #tpu.memory_space<vmem>>, %arg19: memref<16x48xbf16, #tpu.memory_space<vmem>>, %arg20: memref<16x48xbf16, #tpu.memory_space<vmem>>) attributes {dimension_semantics = [#tpu.dimension_semantics<arbitrary>], iteration_bounds = array<i64: 2>, scalar_prefetch = 0 : i64, scratch_operands = 4 : i64, tpu.core_type = #tpu.core_type<tc>, window_params = [{pipeline_mode = #tpu.pipeline_mode<synchronous>, transform_indices = @transform_0, window_bounds = array<i64: 16, 32>}, {pipeline_mode = #tpu.pipeline_mode<synchronous>, transform_indices = @transform_1, window_bounds = array<i64: 48, 32>}, {pipeline_mode = #tpu.pipeline_mode<synchronous>, transform_indices = @transform_2, window_bounds = array<i64: 48, 1>}, {pipeline_mode = #tpu.pipeline_mode<synchronous>, transform_indices = @transform_3, window_bounds = array<i64: 48, 1>}, {pipeline_mode = #tpu.pipeline_mode<synchronous>, transform_indices = @transform_4, window_bounds = array<i64: 1, 48>}, {pipeline_mode = #tpu.pipeline_mode<synchronous>, transform_indices = @transform_5, window_bounds = array<i64: 1, 48>}, {transform_indices = @transform_6, window_bounds = array<i64: 1, 32, 160>}, {transform_indices = @transform_7, window_bounds = array<i64: 1, 1, 160>}, {transform_indices = @transform_8, window_bounds = array<i64: 1, 32, 32>}, {transform_indices = @transform_9, window_bounds = array<i64: 1, 1, 32>}, {transform_indices = @transform_10, window_bounds = array<i64: 1, 1, 32>}, {transform_indices = @transform_11, window_bounds = array<i64: 1, 1, 32>}, {transform_indices = @transform_12, window_bounds = array<i64: 1, 1, 32>}, {transform_indices = @transform_13, window_bounds = array<i64: 1, 1, 32>}, {pipeline_mode = #tpu.pipeline_mode<synchronous>, transform_indices = @transform_14, window_bounds = array<i64: 16, 32>}, {pipeline_mode = #tpu.pipeline_mode<synchronous>, transform_indices = @transform_15, window_bounds = array<i64: 48, 32>}]} {
    %c0_i32 = arith.constant 0 : i32
    %0 = arith.cmpi eq, %arg0, %c0_i32 : i32
    %1 = arith.extui %0 : i1 to i32
    %c0_i32_0 = arith.constant 0 : i32
    %2 = arith.cmpi ne, %1, %c0_i32_0 : i32
    scf.if %2 {
      %c0_67 = arith.constant 0 : index
      %c0_68 = arith.constant 0 : index
      %159 = vector.load %arg1[%c0_67, %c0_68] : memref<16x32xf32, #tpu.memory_space<vmem>>, vector<16x32xf32>
      %c0_69 = arith.constant 0 : index
      %c0_70 = arith.constant 0 : index
      %160 = vector.load %arg15[%c0_69, %c0_70] : memref<16x32xf32, #tpu.memory_space<vmem>>, vector<16x32xf32>
      tpu.vector_store %arg15[%c0_69, %c0_70], %159 {strides = array<i32>} : memref<16x32xf32, #tpu.memory_space<vmem>>, vector<16x32xf32>,
      %c0_71 = arith.constant 0 : index
      %c0_72 = arith.constant 0 : index
      %161 = vector.load %arg2[%c0_71, %c0_72] : memref<48x32xf32, #tpu.memory_space<vmem>>, vector<48x32xf32>
      %c0_73 = arith.constant 0 : index
      %c0_74 = arith.constant 0 : index
      %162 = vector.load %arg16[%c0_73, %c0_74] : memref<48x32xf32, #tpu.memory_space<vmem>>, vector<48x32xf32>
      tpu.vector_store %arg16[%c0_73, %c0_74], %161 {strides = array<i32>} : memref<48x32xf32, #tpu.memory_space<vmem>>, vector<48x32xf32>,
      %163 = tpu.iota {dimensions = array<i32: 1>} : vector<48x16xi32>
      %164 = tpu.iota {dimensions = array<i32: 0>} : vector<16x48xi32>
      %c0_75 = arith.constant 0 : index
      %c0_76 = arith.constant 0 : index
      %165 = vector.load %arg3[%c0_75, %c0_76] : memref<48x1xi32, #tpu.memory_space<vmem>>, vector<48x1xi32>
      %166 = vector.broadcast %165 : vector<48x1xi32> to vector<48x16xi32>
      %167 = arith.cmpi eq, %163, %166 : vector<48x16xi32>
      %cst_77 = arith.constant 1.000000e+00 : f32
      %cst_78 = arith.constant 0.000000e+00 : f32
      %168 = vector.broadcast %cst_77 : f32 to vector<48x16xf32>
      %169 = vector.broadcast %cst_78 : f32 to vector<48x16xf32>
      %170 = arith.select %167, %168, %169 : vector<48x16xi1>, vector<48x16xf32>
      %171 = arith.truncf %170 : vector<48x16xf32> to vector<48x16xbf16>
      %c0_79 = arith.constant 0 : index
      %c0_80 = arith.constant 0 : index
      %172 = vector.load %arg17[%c0_79, %c0_80] : memref<48x16xbf16, #tpu.memory_space<vmem>>, vector<48x16xbf16>
      tpu.vector_store %arg17[%c0_79, %c0_80], %171 {strides = array<i32>} : memref<48x16xbf16, #tpu.memory_space<vmem>>, vector<48x16xbf16>,
      %c0_81 = arith.constant 0 : index
      %c0_82 = arith.constant 0 : index
      %173 = vector.load %arg4[%c0_81, %c0_82] : memref<48x1xi32, #tpu.memory_space<vmem>>, vector<48x1xi32>
      %174 = vector.broadcast %173 : vector<48x1xi32> to vector<48x16xi32>
      %175 = arith.cmpi eq, %163, %174 : vector<48x16xi32>
      %cst_83 = arith.constant 1.000000e+00 : f32
      %cst_84 = arith.constant 0.000000e+00 : f32
      %176 = vector.broadcast %cst_83 : f32 to vector<48x16xf32>
      %177 = vector.broadcast %cst_84 : f32 to vector<48x16xf32>
      %178 = arith.select %175, %176, %177 : vector<48x16xi1>, vector<48x16xf32>
      %179 = arith.truncf %178 : vector<48x16xf32> to vector<48x16xbf16>
      %c0_85 = arith.constant 0 : index
      %c0_86 = arith.constant 0 : index
      %180 = vector.load %arg18[%c0_85, %c0_86] : memref<48x16xbf16, #tpu.memory_space<vmem>>, vector<48x16xbf16>
      tpu.vector_store %arg18[%c0_85, %c0_86], %179 {strides = array<i32>} : memref<48x16xbf16, #tpu.memory_space<vmem>>, vector<48x16xbf16>,
      %c0_87 = arith.constant 0 : index
      %c0_88 = arith.constant 0 : index
      %181 = vector.load %arg5[%c0_87, %c0_88] : memref<1x48xi32, #tpu.memory_space<vmem>>, vector<1x48xi32>
      %182 = vector.broadcast %181 : vector<1x48xi32> to vector<16x48xi32>
      %183 = arith.cmpi eq, %164, %182 : vector<16x48xi32>
      %cst_89 = arith.constant 1.000000e+00 : f32
      %cst_90 = arith.constant 0.000000e+00 : f32
      %184 = vector.broadcast %cst_89 : f32 to vector<16x48xf32>
      %185 = vector.broadcast %cst_90 : f32 to vector<16x48xf32>
      %186 = arith.select %183, %184, %185 : vector<16x48xi1>, vector<16x48xf32>
      %187 = arith.truncf %186 : vector<16x48xf32> to vector<16x48xbf16>
      %c0_91 = arith.constant 0 : index
      %c0_92 = arith.constant 0 : index
      %188 = vector.load %arg19[%c0_91, %c0_92] : memref<16x48xbf16, #tpu.memory_space<vmem>>, vector<16x48xbf16>
      tpu.vector_store %arg19[%c0_91, %c0_92], %187 {strides = array<i32>} : memref<16x48xbf16, #tpu.memory_space<vmem>>, vector<16x48xbf16>,
      %c0_93 = arith.constant 0 : index
      %c0_94 = arith.constant 0 : index
      %189 = vector.load %arg6[%c0_93, %c0_94] : memref<1x48xi32, #tpu.memory_space<vmem>>, vector<1x48xi32>
      %190 = vector.broadcast %189 : vector<1x48xi32> to vector<16x48xi32>
      %191 = arith.cmpi eq, %164, %190 : vector<16x48xi32>
      %cst_95 = arith.constant 1.000000e+00 : f32
      %cst_96 = arith.constant 0.000000e+00 : f32
      %192 = vector.broadcast %cst_95 : f32 to vector<16x48xf32>
      %193 = vector.broadcast %cst_96 : f32 to vector<16x48xf32>
      %194 = arith.select %191, %192, %193 : vector<16x48xi1>, vector<16x48xf32>
      %195 = arith.truncf %194 : vector<16x48xf32> to vector<16x48xbf16>
      %c0_97 = arith.constant 0 : index
      %c0_98 = arith.constant 0 : index
      %196 = vector.load %arg20[%c0_97, %c0_98] : memref<16x48xbf16, #tpu.memory_space<vmem>>, vector<16x48xbf16>
      tpu.vector_store %arg20[%c0_97, %c0_98], %195 {strides = array<i32>} : memref<16x48xbf16, #tpu.memory_space<vmem>>, vector<16x48xbf16>,
    } else {
    }
    %c0 = arith.constant 0 : index
    %c0_1 = arith.constant 0 : index
    %3 = vector.load %arg15[%c0, %c0_1] : memref<16x32xf32, #tpu.memory_space<vmem>>, vector<16x32xf32>
    %c0_2 = arith.constant 0 : index
    %c0_3 = arith.constant 0 : index
    %4 = vector.load %arg16[%c0_2, %c0_3] : memref<48x32xf32, #tpu.memory_space<vmem>>, vector<48x32xf32>
    %5 = arith.truncf %3 : vector<16x32xf32> to vector<16x32xbf16>
    %c0_4 = arith.constant 0 : index
    %c0_5 = arith.constant 0 : index
    %c0_6 = arith.constant 0 : index
    %6 = vector.load %arg7[%c0_4, %c0_5, %c0_6] : memref<1x32x160xbf16, #tpu.memory_space<vmem>>, vector<1x32x160xbf16>
    %7 = vector.shape_cast %6 : vector<1x32x160xbf16> to vector<32x160xbf16>
    %cst = arith.constant dense<0.000000e+00> : vector<16x160xf32>
    %8 = tpu.matmul %5, %7, %cst {dimension_numbers = #tpu.dot_dimension_numbers<[1], [0], [0], [1], [0, 0, 1, 1], [], []>} : vector<16x32xbf16>, vector<32x160xbf16>, vector<16x160xf32> -> vector<16x160xf32>
    %c0_7 = arith.constant 0 : index
    %c0_8 = arith.constant 0 : index
    %c0_9 = arith.constant 0 : index
    %9 = vector.load %arg8[%c0_7, %c0_8, %c0_9] : memref<1x1x160xf32, #tpu.memory_space<vmem>>, vector<1x1x160xf32>
    %10 = vector.shape_cast %9 : vector<1x1x160xf32> to vector<1x160xf32>
    %11 = vector.broadcast %10 : vector<1x160xf32> to vector<16x160xf32>
    %12 = arith.addf %8, %11 : vector<16x160xf32>
    %13 = arith.truncf %4 : vector<48x32xf32> to vector<48x32xbf16>
    %c0_10 = arith.constant 0 : index
    %c0_11 = arith.constant 0 : index
    %c0_12 = arith.constant 0 : index
    %14 = vector.load %arg9[%c0_10, %c0_11, %c0_12] : memref<1x32x32xbf16, #tpu.memory_space<vmem>>, vector<1x32x32xbf16>
    %15 = vector.shape_cast %14 : vector<1x32x32xbf16> to vector<32x32xbf16>
    %cst_13 = arith.constant dense<0.000000e+00> : vector<48x32xf32>
    %16 = tpu.matmul %13, %15, %cst_13 {dimension_numbers = #tpu.dot_dimension_numbers<[1], [0], [0], [1], [0, 0, 1, 1], [], []>} : vector<48x32xbf16>, vector<32x32xbf16>, vector<48x32xf32> -> vector<48x32xf32>
    %c0_14 = arith.constant 0 : index
    %c0_15 = arith.constant 0 : index
    %c0_16 = arith.constant 0 : index
    %17 = vector.load %arg10[%c0_14, %c0_15, %c0_16] : memref<1x1x32xf32, #tpu.memory_space<vmem>>, vector<1x1x32xf32>
    %18 = vector.shape_cast %17 : vector<1x1x32xf32> to vector<1x32xf32>
    %19 = vector.broadcast %18 : vector<1x32xf32> to vector<48x32xf32>
    %20 = arith.addf %16, %19 : vector<48x32xf32>
    %21 = vector.extract_strided_slice %12 {offsets = [0, 32], sizes = [16, 96], strides = [1, 1]} : vector<16x160xf32> to vector<16x96xf32>
    %22 = arith.truncf %21 : vector<16x96xf32> to vector<16x96xbf16>
    %23 = vector.extract_strided_slice %12 {offsets = [0, 64], sizes = [16, 96], strides = [1, 1]} : vector<16x160xf32> to vector<16x96xf32>
    %24 = arith.truncf %23 : vector<16x96xf32> to vector<16x96xbf16>
    %c0_17 = arith.constant 0 : index
    %c0_18 = arith.constant 0 : index
    %25 = vector.load %arg17[%c0_17, %c0_18] : memref<48x16xbf16, #tpu.memory_space<vmem>>, vector<48x16xbf16>
    %cst_19 = arith.constant dense<0.000000e+00> : vector<48x96xf32>
    %26 = tpu.matmul %25, %22, %cst_19 {dimension_numbers = #tpu.dot_dimension_numbers<[1], [0], [0], [1], [0, 0, 1, 1], [], []>} : vector<48x16xbf16>, vector<16x96xbf16>, vector<48x96xf32> -> vector<48x96xf32>
    %c0_20 = arith.constant 0 : index
    %c0_21 = arith.constant 0 : index
    %27 = vector.load %arg18[%c0_20, %c0_21] : memref<48x16xbf16, #tpu.memory_space<vmem>>, vector<48x16xbf16>
    %cst_22 = arith.constant dense<0.000000e+00> : vector<48x96xf32>
    %28 = tpu.matmul %27, %24, %cst_22 {dimension_numbers = #tpu.dot_dimension_numbers<[1], [0], [0], [1], [0, 0, 1, 1], [], []>} : vector<48x16xbf16>, vector<16x96xbf16>, vector<48x96xf32> -> vector<48x96xf32>
    %29 = vector.extract_strided_slice %12 {offsets = [0, 0], sizes = [16, 32], strides = [1, 1]} : vector<16x160xf32> to vector<16x32xf32>
    %30 = vector.extract_strided_slice %26 {offsets = [0, 0], sizes = [48, 32], strides = [1, 1]} : vector<48x96xf32> to vector<48x32xf32>
    %31 = vector.extract_strided_slice %26 {offsets = [0, 32], sizes = [48, 32], strides = [1, 1]} : vector<48x96xf32> to vector<48x32xf32>
    %32 = vector.extract_strided_slice %26 {offsets = [0, 64], sizes = [48, 32], strides = [1, 1]} : vector<48x96xf32> to vector<48x32xf32>
    %33 = vector.extract_strided_slice %28 {offsets = [0, 0], sizes = [48, 32], strides = [1, 1]} : vector<48x96xf32> to vector<48x32xf32>
    %34 = vector.extract_strided_slice %28 {offsets = [0, 32], sizes = [48, 32], strides = [1, 1]} : vector<48x96xf32> to vector<48x32xf32>
    %35 = vector.extract_strided_slice %28 {offsets = [0, 64], sizes = [48, 32], strides = [1, 1]} : vector<48x96xf32> to vector<48x32xf32>
    %c0_23 = arith.constant 0 : index
    %c0_24 = arith.constant 0 : index
    %c0_25 = arith.constant 0 : index
    %36 = vector.load %arg13[%c0_23, %c0_24, %c0_25] : memref<1x1x32xf32, #tpu.memory_space<vmem>>, vector<1x1x32xf32>
    %37 = vector.shape_cast %36 : vector<1x1x32xf32> to vector<1x32xf32>
    %c0_26 = arith.constant 0 : index
    %c0_27 = arith.constant 0 : index
    %c0_28 = arith.constant 0 : index
    %38 = vector.load %arg14[%c0_26, %c0_27, %c0_28] : memref<1x1x32xf32, #tpu.memory_space<vmem>>, vector<1x1x32xf32>
    %39 = vector.shape_cast %38 : vector<1x1x32xf32> to vector<1x32xf32>
    %40 = arith.addf %20, %31 : vector<48x32xf32>
    %41 = arith.addf %40, %34 : vector<48x32xf32>
    %cst_29 = arith.constant dense<0.000000e+00> : vector<48xf32>
    %42 = vector.multi_reduction <add>, %41, %cst_29 [1] : vector<48x32xf32> to vector<48xf32>
    %43 = vector.shape_cast %42 : vector<48xf32> to vector<48x1xf32>
    %cst_30 = arith.constant 3.200000e+01 : f32
    %44 = vector.broadcast %cst_30 : f32 to vector<48x1xf32>
    %45 = arith.divf %43, %44 : vector<48x1xf32>
    %46 = vector.broadcast %45 : vector<48x1xf32> to vector<48x32xf32>
    %47 = arith.subf %41, %46 : vector<48x32xf32>
    %48 = arith.mulf %47, %47 : vector<48x32xf32>
    %cst_31 = arith.constant dense<0.000000e+00> : vector<48xf32>
    %49 = vector.multi_reduction <add>, %48, %cst_31 [1] : vector<48x32xf32> to vector<48xf32>
    %50 = vector.shape_cast %49 : vector<48xf32> to vector<48x1xf32>
    %cst_32 = arith.constant 3.200000e+01 : f32
    %51 = vector.broadcast %cst_32 : f32 to vector<48x1xf32>
    %52 = arith.divf %50, %51 : vector<48x1xf32>
    %53 = vector.broadcast %45 : vector<48x1xf32> to vector<48x32xf32>
    %54 = arith.subf %41, %53 : vector<48x32xf32>
    %cst_33 = arith.constant 9.99999974E-6 : f32
    %55 = vector.broadcast %cst_33 : f32 to vector<48x1xf32>
    %56 = arith.addf %52, %55 : vector<48x1xf32>
    %57 = math.rsqrt %56 : vector<48x1xf32>
    %58 = vector.broadcast %57 : vector<48x1xf32> to vector<48x32xf32>
    %59 = arith.mulf %54, %58 : vector<48x32xf32>
    %60 = vector.broadcast %37 : vector<1x32xf32> to vector<48x32xf32>
    %61 = arith.mulf %59, %60 : vector<48x32xf32>
    %62 = vector.broadcast %39 : vector<1x32xf32> to vector<48x32xf32>
    %63 = arith.addf %61, %62 : vector<48x32xf32>
    %cst_34 = arith.constant 0.000000e+00 : f32
    %64 = vector.broadcast %cst_34 : f32 to vector<48x32xf32>
    %65 = arith.maximumf %63, %64 : vector<48x32xf32>
    %66 = arith.addf %4, %65 : vector<48x32xf32>
    %67 = arith.addf %20, %33 : vector<48x32xf32>
    %68 = arith.addf %67, %32 : vector<48x32xf32>
    %cst_35 = arith.constant dense<0.000000e+00> : vector<48xf32>
    %69 = vector.multi_reduction <add>, %68, %cst_35 [1] : vector<48x32xf32> to vector<48xf32>
    %70 = vector.shape_cast %69 : vector<48xf32> to vector<48x1xf32>
    %cst_36 = arith.constant 3.200000e+01 : f32
    %71 = vector.broadcast %cst_36 : f32 to vector<48x1xf32>
    %72 = arith.divf %70, %71 : vector<48x1xf32>
    %73 = vector.broadcast %72 : vector<48x1xf32> to vector<48x32xf32>
    %74 = arith.subf %68, %73 : vector<48x32xf32>
    %75 = arith.mulf %74, %74 : vector<48x32xf32>
    %cst_37 = arith.constant dense<0.000000e+00> : vector<48xf32>
    %76 = vector.multi_reduction <add>, %75, %cst_37 [1] : vector<48x32xf32> to vector<48xf32>
    %77 = vector.shape_cast %76 : vector<48xf32> to vector<48x1xf32>
    %cst_38 = arith.constant 3.200000e+01 : f32
    %78 = vector.broadcast %cst_38 : f32 to vector<48x1xf32>
    %79 = arith.divf %77, %78 : vector<48x1xf32>
    %80 = vector.broadcast %72 : vector<48x1xf32> to vector<48x32xf32>
    %81 = arith.subf %68, %80 : vector<48x32xf32>
    %cst_39 = arith.constant 9.99999974E-6 : f32
    %82 = vector.broadcast %cst_39 : f32 to vector<48x1xf32>
    %83 = arith.addf %79, %82 : vector<48x1xf32>
    %84 = math.rsqrt %83 : vector<48x1xf32>
    %85 = vector.broadcast %84 : vector<48x1xf32> to vector<48x32xf32>
    %86 = arith.mulf %81, %85 : vector<48x32xf32>
    %87 = vector.broadcast %37 : vector<1x32xf32> to vector<48x32xf32>
    %88 = arith.mulf %86, %87 : vector<48x32xf32>
    %89 = vector.broadcast %39 : vector<1x32xf32> to vector<48x32xf32>
    %90 = arith.addf %88, %89 : vector<48x32xf32>
    %cst_40 = arith.constant 0.000000e+00 : f32
    %91 = vector.broadcast %cst_40 : f32 to vector<48x32xf32>
    %92 = arith.maximumf %90, %91 : vector<48x32xf32>
    %93 = arith.addf %4, %92 : vector<48x32xf32>
    %94 = arith.negf %66 : vector<48x32xf32>
    %95 = math.exp %94 : vector<48x32xf32>
    %cst_41 = arith.constant 1.000000e+00 : f32
    %96 = vector.broadcast %cst_41 : f32 to vector<48x32xf32>
    %97 = arith.addf %96, %95 : vector<48x32xf32>
    %98 = arith.divf %96, %97 : vector<48x32xf32>
    %99 = arith.negf %93 : vector<48x32xf32>
    %100 = math.exp %99 : vector<48x32xf32>
    %cst_42 = arith.constant 1.000000e+00 : f32
    %101 = vector.broadcast %cst_42 : f32 to vector<48x32xf32>
    %102 = arith.addf %101, %100 : vector<48x32xf32>
    %103 = arith.divf %101, %102 : vector<48x32xf32>
    %104 = arith.mulf %30, %98 : vector<48x32xf32>
    %105 = tpu.concatenate %104, %98 in 1 : vector<48x32xf32>, vector<48x32xf32> -> vector<48x64xf32>
    %106 = arith.truncf %105 : vector<48x64xf32> to vector<48x64xbf16>
    %107 = arith.mulf %35, %103 : vector<48x32xf32>
    %108 = tpu.concatenate %107, %103 in 1 : vector<48x32xf32>, vector<48x32xf32> -> vector<48x64xf32>
    %109 = arith.truncf %108 : vector<48x64xf32> to vector<48x64xbf16>
    %c0_43 = arith.constant 0 : index
    %c0_44 = arith.constant 0 : index
    %110 = vector.load %arg20[%c0_43, %c0_44] : memref<16x48xbf16, #tpu.memory_space<vmem>>, vector<16x48xbf16>
    %cst_45 = arith.constant dense<0.000000e+00> : vector<16x64xf32>
    %111 = tpu.matmul %110, %106, %cst_45 {dimension_numbers = #tpu.dot_dimension_numbers<[1], [0], [0], [1], [0, 0, 1, 1], [], []>} : vector<16x48xbf16>, vector<48x64xbf16>, vector<16x64xf32> -> vector<16x64xf32>
    %c0_46 = arith.constant 0 : index
    %c0_47 = arith.constant 0 : index
    %112 = vector.load %arg19[%c0_46, %c0_47] : memref<16x48xbf16, #tpu.memory_space<vmem>>, vector<16x48xbf16>
    %cst_48 = arith.constant dense<0.000000e+00> : vector<16x64xf32>
    %113 = tpu.matmul %112, %109, %cst_48 {dimension_numbers = #tpu.dot_dimension_numbers<[1], [0], [0], [1], [0, 0, 1, 1], [], []>} : vector<16x48xbf16>, vector<48x64xbf16>, vector<16x64xf32> -> vector<16x64xf32>
    %114 = vector.extract_strided_slice %111 {offsets = [0, 0], sizes = [16, 32], strides = [1, 1]} : vector<16x64xf32> to vector<16x32xf32>
    %115 = vector.extract_strided_slice %111 {offsets = [0, 32], sizes = [16, 32], strides = [1, 1]} : vector<16x64xf32> to vector<16x32xf32>
    %cst_49 = arith.constant 9.99999997E-7 : f32
    %116 = vector.broadcast %cst_49 : f32 to vector<16x32xf32>
    %117 = arith.addf %115, %116 : vector<16x32xf32>
    %118 = tpu.reciprocal %117 {approx = true} : vector<16x32xf32> -> vector<16x32xf32>
    %119 = arith.mulf %114, %118 : vector<16x32xf32>
    %120 = vector.extract_strided_slice %113 {offsets = [0, 0], sizes = [16, 32], strides = [1, 1]} : vector<16x64xf32> to vector<16x32xf32>
    %121 = vector.extract_strided_slice %113 {offsets = [0, 32], sizes = [16, 32], strides = [1, 1]} : vector<16x64xf32> to vector<16x32xf32>
    %cst_50 = arith.constant 9.99999997E-7 : f32
    %122 = vector.broadcast %cst_50 : f32 to vector<16x32xf32>
    %123 = arith.addf %121, %122 : vector<16x32xf32>
    %124 = tpu.reciprocal %123 {approx = true} : vector<16x32xf32> -> vector<16x32xf32>
    %125 = arith.mulf %120, %124 : vector<16x32xf32>
    %126 = arith.addf %29, %119 : vector<16x32xf32>
    %127 = arith.addf %126, %125 : vector<16x32xf32>
    %c0_51 = arith.constant 0 : index
    %c0_52 = arith.constant 0 : index
    %c0_53 = arith.constant 0 : index
    %128 = vector.load %arg11[%c0_51, %c0_52, %c0_53] : memref<1x1x32xf32, #tpu.memory_space<vmem>>, vector<1x1x32xf32>
    %129 = vector.shape_cast %128 : vector<1x1x32xf32> to vector<1x32xf32>
    %c0_54 = arith.constant 0 : index
    %c0_55 = arith.constant 0 : index
    %c0_56 = arith.constant 0 : index
    %130 = vector.load %arg12[%c0_54, %c0_55, %c0_56] : memref<1x1x32xf32, #tpu.memory_space<vmem>>, vector<1x1x32xf32>
    %131 = vector.shape_cast %130 : vector<1x1x32xf32> to vector<1x32xf32>
    %cst_57 = arith.constant dense<0.000000e+00> : vector<16xf32>
    %132 = vector.multi_reduction <add>, %127, %cst_57 [1] : vector<16x32xf32> to vector<16xf32>
    %133 = vector.shape_cast %132 : vector<16xf32> to vector<16x1xf32>
    %cst_58 = arith.constant 3.200000e+01 : f32
    %134 = vector.broadcast %cst_58 : f32 to vector<16x1xf32>
    %135 = arith.divf %133, %134 : vector<16x1xf32>
    %136 = vector.broadcast %135 : vector<16x1xf32> to vector<16x32xf32>
    %137 = arith.subf %127, %136 : vector<16x32xf32>
    %138 = arith.mulf %137, %137 : vector<16x32xf32>
    %cst_59 = arith.constant dense<0.000000e+00> : vector<16xf32>
    %139 = vector.multi_reduction <add>, %138, %cst_59 [1] : vector<16x32xf32> to vector<16xf32>
    %140 = vector.shape_cast %139 : vector<16xf32> to vector<16x1xf32>
    %cst_60 = arith.constant 3.200000e+01 : f32
    %141 = vector.broadcast %cst_60 : f32 to vector<16x1xf32>
    %142 = arith.divf %140, %141 : vector<16x1xf32>
    %143 = vector.broadcast %135 : vector<16x1xf32> to vector<16x32xf32>
    %144 = arith.subf %127, %143 : vector<16x32xf32>
    %cst_61 = arith.constant 9.99999974E-6 : f32
    %145 = vector.broadcast %cst_61 : f32 to vector<16x1xf32>
    %146 = arith.addf %142, %145 : vector<16x1xf32>
    %147 = math.rsqrt %146 : vector<16x1xf32>
    %148 = vector.broadcast %147 : vector<16x1xf32> to vector<16x32xf32>
    %149 = arith.mulf %144, %148 : vector<16x32xf32>
    %150 = vector.broadcast %129 : vector<1x32xf32> to vector<16x32xf32>
    %151 = arith.mulf %149, %150 : vector<16x32xf32>
    %152 = vector.broadcast %131 : vector<1x32xf32> to vector<16x32xf32>
    %153 = arith.addf %151, %152 : vector<16x32xf32>
    %cst_62 = arith.constant 0.000000e+00 : f32
    %154 = vector.broadcast %cst_62 : f32 to vector<16x32xf32>
    %155 = arith.maximumf %153, %154 : vector<16x32xf32>
    %156 = arith.addf %3, %155 : vector<16x32xf32>
    %c0_63 = arith.constant 0 : index
    %c0_64 = arith.constant 0 : index
    %157 = vector.load %arg15[%c0_63, %c0_64] : memref<16x32xf32, #tpu.memory_space<vmem>>, vector<16x32xf32>
    tpu.vector_store %arg15[%c0_63, %c0_64], %156 {strides = array<i32>} : memref<16x32xf32, #tpu.memory_space<vmem>>, vector<16x32xf32>,
    %c0_65 = arith.constant 0 : index
    %c0_66 = arith.constant 0 : index
    %158 = vector.load %arg16[%c0_65, %c0_66] : memref<48x32xf32, #tpu.memory_space<vmem>>, vector<48x32xf32>
    tpu.vector_store %arg16[%c0_65, %c0_66], %66 {strides = array<i32>} : memref<48x32xf32, #tpu.memory_space<vmem>>, vector<48x32xf32>,
    return
  }
  func.func @transform_0(%arg0: i32) -> (i32, i32) {
    %c0_i32 = arith.constant 0 : i32
    %c0_i32_0 = arith.constant 0 : i32
    %c0_i32_1 = arith.constant 0 : i32
    return %c0_i32, %c0_i32_0 : i32, i32
  }
  func.func @transform_1(%arg0: i32) -> (i32, i32) {
    %c0_i32 = arith.constant 0 : i32
    %c0_i32_0 = arith.constant 0 : i32
    %c0_i32_1 = arith.constant 0 : i32
    return %c0_i32, %c0_i32_0 : i32, i32
  }
  func.func @transform_2(%arg0: i32) -> (i32, i32) {
    %c0_i32 = arith.constant 0 : i32
    %c0_i32_0 = arith.constant 0 : i32
    %c0_i32_1 = arith.constant 0 : i32
    return %c0_i32, %c0_i32_0 : i32, i32
  }
  func.func @transform_3(%arg0: i32) -> (i32, i32) {
    %c0_i32 = arith.constant 0 : i32
    %c0_i32_0 = arith.constant 0 : i32
    %c0_i32_1 = arith.constant 0 : i32
    return %c0_i32, %c0_i32_0 : i32, i32
  }
  func.func @transform_4(%arg0: i32) -> (i32, i32) {
    %c0_i32 = arith.constant 0 : i32
    %c0_i32_0 = arith.constant 0 : i32
    %c0_i32_1 = arith.constant 0 : i32
    return %c0_i32, %c0_i32_0 : i32, i32
  }
  func.func @transform_5(%arg0: i32) -> (i32, i32) {
    %c0_i32 = arith.constant 0 : i32
    %c0_i32_0 = arith.constant 0 : i32
    %c0_i32_1 = arith.constant 0 : i32
    return %c0_i32, %c0_i32_0 : i32, i32
  }
  func.func @transform_6(%arg0: i32) -> (i32, i32, i32) {
    %c0_i32 = arith.constant 0 : i32
    %c0_i32_0 = arith.constant 0 : i32
    %c0_i32_1 = arith.constant 0 : i32
    return %arg0, %c0_i32, %c0_i32_0 : i32, i32, i32
  }
  func.func @transform_7(%arg0: i32) -> (i32, i32, i32) {
    %c0_i32 = arith.constant 0 : i32
    %c0_i32_0 = arith.constant 0 : i32
    %c0_i32_1 = arith.constant 0 : i32
    return %arg0, %c0_i32, %c0_i32_0 : i32, i32, i32
  }
  func.func @transform_8(%arg0: i32) -> (i32, i32, i32) {
    %c0_i32 = arith.constant 0 : i32
    %c0_i32_0 = arith.constant 0 : i32
    %c0_i32_1 = arith.constant 0 : i32
    return %arg0, %c0_i32, %c0_i32_0 : i32, i32, i32
  }
  func.func @transform_9(%arg0: i32) -> (i32, i32, i32) {
    %c0_i32 = arith.constant 0 : i32
    %c0_i32_0 = arith.constant 0 : i32
    %c0_i32_1 = arith.constant 0 : i32
    return %arg0, %c0_i32, %c0_i32_0 : i32, i32, i32
  }
  func.func @transform_10(%arg0: i32) -> (i32, i32, i32) {
    %c0_i32 = arith.constant 0 : i32
    %c0_i32_0 = arith.constant 0 : i32
    %c0_i32_1 = arith.constant 0 : i32
    return %arg0, %c0_i32, %c0_i32_0 : i32, i32, i32
  }
  func.func @transform_11(%arg0: i32) -> (i32, i32, i32) {
    %c0_i32 = arith.constant 0 : i32
    %c0_i32_0 = arith.constant 0 : i32
    %c0_i32_1 = arith.constant 0 : i32
    return %arg0, %c0_i32, %c0_i32_0 : i32, i32, i32
  }
  func.func @transform_12(%arg0: i32) -> (i32, i32, i32) {
    %c0_i32 = arith.constant 0 : i32
    %c0_i32_0 = arith.constant 0 : i32
    %c0_i32_1 = arith.constant 0 : i32
    return %arg0, %c0_i32, %c0_i32_0 : i32, i32, i32
  }
  func.func @transform_13(%arg0: i32) -> (i32, i32, i32) {
    %c0_i32 = arith.constant 0 : i32
    %c0_i32_0 = arith.constant 0 : i32
    %c0_i32_1 = arith.constant 0 : i32
    return %arg0, %c0_i32, %c0_i32_0 : i32, i32, i32
  }
  func.func @transform_14(%arg0: i32) -> (i32, i32) {
    %c0_i32 = arith.constant 0 : i32
    %c0_i32_0 = arith.constant 0 : i32
    %c0_i32_1 = arith.constant 0 : i32
    return %c0_i32, %c0_i32_0 : i32, i32
  }
  func.func @transform_15(%arg0: i32) -> (i32, i32) {
    %c0_i32 = arith.constant 0 : i32
    %c0_i32_0 = arith.constant 0 : i32
    %c0_i32_1 = arith.constant 0 : i32
    return %c0_i32, %c0_i32_0 : i32, i32
  }
}

</mosaic_0001>

<llo_original>
// kernel: layered_gated_gcn_pallas.1
$region0: #{layered_gated_gcn_pallas.1}
  #allocation0 [shape = 'u32[]', space=smem, size = 0x4, offset = 0x4, fixed_abs, tag = 'smem constant byte address 0x4 - core index']
  #allocation1 [shape = 'u32[144,128]{1,0:T(1,128)}', space=vmem, size = 0x12000, scoped, tag = 'internal scratch']
  #allocation2 [shape = 'bf16[48,16]{1,0:T(8,128)(2,1)}', space=vmem, size = 0x3000, scoped, tag = 'scratch operand']
  #allocation3 [shape = 'bf16[48,16]{1,0:T(8,128)(2,1)}', space=vmem, size = 0x3000, scoped, tag = 'scratch operand']
  #allocation4 [shape = 'bf16[16,48]{1,0:T(8,128)(2,1)}', space=vmem, size = 0x1000, scoped, tag = 'scratch operand']
  #allocation5 [shape = 'bf16[16,48]{1,0:T(8,128)(2,1)}', space=vmem, size = 0x1000, scoped, tag = 'scratch operand']
  %s0 = inlined_call_operand.vmem [shape: f32[16,32], index: 0, kind: input, shape index: {}]
  %s1 = inlined_call_operand.vmem [shape: f32[48,32], index: 1, kind: input, shape index: {}]
  %s2 = inlined_call_operand.vmem [shape: s32[48,1], index: 2, kind: input, shape index: {}]
  %s3 = inlined_call_operand.vmem [shape: s32[48,1], index: 3, kind: input, shape index: {}]
  %s4 = inlined_call_operand.vmem [shape: s32[1,48], index: 4, kind: input, shape index: {}]
  %s5 = inlined_call_operand.vmem [shape: s32[1,48], index: 5, kind: input, shape index: {}]
  %s6 = inlined_call_operand.vmem [shape: bf16[2,32,160], index: 6, kind: input, shape index: {}]
  %s7 = inlined_call_operand.vmem [shape: f32[2,1,160], index: 7, kind: input, shape index: {}]
  %s8 = inlined_call_operand.vmem [shape: bf16[2,32,32], index: 8, kind: input, shape index: {}]
  %s9 = inlined_call_operand.vmem [shape: f32[2,1,32], index: 9, kind: input, shape index: {}]
  %s10 = inlined_call_operand.vmem [shape: f32[2,1,32], index: 10, kind: input, shape index: {}]
  %s11 = inlined_call_operand.vmem [shape: f32[2,1,32], index: 11, kind: input, shape index: {}]
  %s12 = inlined_call_operand.vmem [shape: f32[2,1,32], index: 12, kind: input, shape index: {}]
  %s13 = inlined_call_operand.vmem [shape: f32[2,1,32], index: 13, kind: input, shape index: {}]
  %s14 = inlined_call_operand.hbm [shape: f32[16,32], index: 14, kind: output, shape index: {0}]
  %s15 = inlined_call_operand.vmem [shape: f32[48,32], index: 15, kind: output, shape index: {1}]
  %16 = xla_tuple %s14, %s15
  %s17 = sld [smem:[#allocation0]]
  $region101: #{layered_gated_gcn_pallas.1} parent=0
    _
  %s19 = ssub.s32 1, %s17
  %s20 = scalar_select 0, %s19, %s17
  $region1: #{layered_gated_gcn_pallas.1} parent=0
    #allocation6 [shape = 'u8[8192]{0}', space=vmem, size = 0x2000, scoped, tag = 'output window, operand 0, single buffered']
    #allocation7 [shape = 's32[2]{0}', space=sflag, size = 0x8, scoped, tag = 'scoped memory for layered_gated_gcn_pallas.1']
    %21 = vsyncpa [#allocation7], 0
    loop: start=0, step=1, limit=4
    $region2: #{layered_gated_gcn_pallas.1} parent=1 // loop_pre_header
      _
    $region3: #{layered_gated_gcn_pallas.1} parent=1 // loop_header
      %s23 = sphi 0, %s27
      %p24 = scmp.ge.s32.totalorder %s23, 4
      %s31 = sphi 0, %s31
      %s33 = sphi 0, %s31
      %s34 = sphi 0, %s33
      %s48 = sphi 0, %s34
      %s52 = sphi 0, %s52
      %s54 = sphi 0, %s52
      %s55 = sphi 0, %s54
      %s69 = sphi 0, %s55
      %s73 = sphi 0, %s73
      %s75 = sphi 0, %s73
      %s76 = sphi 0, %s75
      %s90 = sphi 0, %s76
      %s94 = sphi 0, %s94
      %s96 = sphi 0, %s94
      %s97 = sphi 0, %s96
      %s111 = sphi 0, %s97
      %s115 = sphi 0, %s115
      %s117 = sphi 0, %s115
      %s118 = sphi 0, %s117
      %s132 = sphi 0, %s118
      %s136 = sphi 0, %s136
      %s138 = sphi 0, %s136
      %s139 = sphi 0, %s138
      %s153 = sphi 0, %s139
      %s159 = sphi 0, %s161
      %s162 = sphi 0, %s159
      %s163 = sphi 0, %s162
      %s179 = sphi 0, %s163
      %s185 = sphi 0, %s187
      %s188 = sphi 0, %s185
      %s189 = sphi 0, %s188
      %s205 = sphi 0, %s189
      %s211 = sphi 0, %s213
      %s214 = sphi 0, %s211
      %s215 = sphi 0, %s214
      %s231 = sphi 0, %s215
      %s237 = sphi 0, %s239
      %s240 = sphi 0, %s237
      %s241 = sphi 0, %s240
      %s257 = sphi 0, %s241
      %s263 = sphi 0, %s265
      %s266 = sphi 0, %s263
      %s267 = sphi 0, %s266
      %s283 = sphi 0, %s267
      %s289 = sphi 0, %s291
      %s292 = sphi 0, %s289
      %s293 = sphi 0, %s292
      %s309 = sphi 0, %s293
      %s315 = sphi 0, %s317
      %s318 = sphi 0, %s315
      %s319 = sphi 0, %s318
      %s335 = sphi 0, %s319
      %s341 = sphi 0, %s343
      %s344 = sphi 0, %s341
      %s345 = sphi 0, %s344
      %s361 = sphi 0, %s345
      %s365 = sphi 0, %s365
      %s367 = sphi 0, %s365
      %s368 = sphi 0, %s367
      %s382 = sphi 0, %s368
      %s386 = sphi 0, %s386
      %s388 = sphi 0, %s386
      %s389 = sphi 0, %s388
      %s403 = sphi 0, %s389
    $region4: #{layered_gated_gcn_pallas.1} parent=1 // loop_header_branch
      %26 = sbr.rel (%p24) target = $region8
    $region5: #{layered_gated_gcn_pallas.1} parent=1 // loop_body
      %s28 = ssub.s32 %s23, 1
      %s29 = ssub.s32 %s23, 2
      %s30 = sadd.s32 %s23, 1
      %s32 = sadd.s32 %s31, 1
      %p35 = scmp.eq.s32.totalorder %s23, 1
      %p36 = scmp.ne.s32.totalorder %s31, %s33
      %p37 = scmp.eq.s32.totalorder %s23, 0
      %p38 = por %p36, %p37
      %p39 = scmp.ne.s32.totalorder %s31, %s33
      %p40 = scmp.eq.s32.totalorder %s28, 1
      %p41 = por %p39, %p40
      %p42 = scmp.ne.s32.totalorder %s33, %s34
      %p43 = scmp.eq.s32.totalorder %s28, 0
      %p44 = por %p42, %p43
      %p45 = scmp.ne.s32.totalorder %s33, %s34
      %p46 = scmp.eq.s32.totalorder %s29, 1
      %p47 = por %p45, %p46
      %p49 = scmp.ne.s32.totalorder %s34, %s48
      %p50 = scmp.eq.s32.totalorder %s29, 0
      %p51 = por %p49, %p50
      %s53 = sadd.s32 %s52, 1
      %p56 = scmp.eq.s32.totalorder %s23, 1
      %p57 = scmp.ne.s32.totalorder %s52, %s54
      %p58 = scmp.eq.s32.totalorder %s23, 0
      %p59 = por %p57, %p58
      %p60 = scmp.ne.s32.totalorder %s52, %s54
      %p61 = scmp.eq.s32.totalorder %s28, 1
      %p62 = por %p60, %p61
      %p63 = scmp.ne.s32.totalorder %s54, %s55
      %p64 = scmp.eq.s32.totalorder %s28, 0
      %p65 = por %p63, %p64
      %p66 = scmp.ne.s32.totalorder %s54, %s55
      %p67 = scmp.eq.s32.totalorder %s29, 1
      %p68 = por %p66, %p67
      %p70 = scmp.ne.s32.totalorder %s55, %s69
      %p71 = scmp.eq.s32.totalorder %s29, 0
      %p72 = por %p70, %p71
      %s74 = sadd.s32 %s73, 1
      %p77 = scmp.eq.s32.totalorder %s23, 1
      %p78 = scmp.ne.s32.totalorder %s73, %s75
      %p79 = scmp.eq.s32.totalorder %s23, 0
      %p80 = por %p78, %p79
      %p81 = scmp.ne.s32.totalorder %s73, %s75
      %p82 = scmp.eq.s32.totalorder %s28, 1
      %p83 = por %p81, %p82
      %p84 = scmp.ne.s32.totalorder %s75, %s76
      %p85 = scmp.eq.s32.totalorder %s28, 0
      %p86 = por %p84, %p85
      %p87 = scmp.ne.s32.totalorder %s75, %s76
      %p88 = scmp.eq.s32.totalorder %s29, 1
      %p89 = por %p87, %p88
      %p91 = scmp.ne.s32.totalorder %s76, %s90
      %p92 = scmp.eq.s32.totalorder %s29, 0
      %p93 = por %p91, %p92
      %s95 = sadd.s32 %s94, 1
      %p98 = scmp.eq.s32.totalorder %s23, 1
      %p99 = scmp.ne.s32.totalorder %s94, %s96
      %p100 = scmp.eq.s32.totalorder %s23, 0
      %p101 = por %p99, %p100
      %p102 = scmp.ne.s32.totalorder %s94, %s96
      %p103 = scmp.eq.s32.totalorder %s28, 1
      %p104 = por %p102, %p103
      %p105 = scmp.ne.s32.totalorder %s96, %s97
      %p106 = scmp.eq.s32.totalorder %s28, 0
      %p107 = por %p105, %p106
      %p108 = scmp.ne.s32.totalorder %s96, %s97
      %p109 = scmp.eq.s32.totalorder %s29, 1
      %p110 = por %p108, %p109
      %p112 = scmp.ne.s32.totalorder %s97, %s111
      %p113 = scmp.eq.s32.totalorder %s29, 0
      %p114 = por %p112, %p113
      %s116 = sadd.s32 %s115, 1
      %p119 = scmp.eq.s32.totalorder %s23, 1
      %p120 = scmp.ne.s32.totalorder %s115, %s117
      %p121 = scmp.eq.s32.totalorder %s23, 0
      %p122 = por %p120, %p121
      %p123 = scmp.ne.s32.totalorder %s115, %s117
      %p124 = scmp.eq.s32.totalorder %s28, 1
      %p125 = por %p123, %p124
      %p126 = scmp.ne.s32.totalorder %s117, %s118
      %p127 = scmp.eq.s32.totalorder %s28, 0
      %p128 = por %p126, %p127
      %p129 = scmp.ne.s32.totalorder %s117, %s118
      %p130 = scmp.eq.s32.totalorder %s29, 1
      %p131 = por %p129, %p130
      %p133 = scmp.ne.s32.totalorder %s118, %s132
      %p134 = scmp.eq.s32.totalorder %s29, 0
      %p135 = por %p133, %p134
      %s137 = sadd.s32 %s136, 1
      %p140 = scmp.eq.s32.totalorder %s23, 1
      %p141 = scmp.ne.s32.totalorder %s136, %s138
      %p142 = scmp.eq.s32.totalorder %s23, 0
      %p143 = por %p141, %p142
      %p144 = scmp.ne.s32.totalorder %s136, %s138
      %p145 = scmp.eq.s32.totalorder %s28, 1
      %p146 = por %p144, %p145
      %p147 = scmp.ne.s32.totalorder %s138, %s139
      %p148 = scmp.eq.s32.totalorder %s28, 0
      %p149 = por %p147, %p148
      %p150 = scmp.ne.s32.totalorder %s138, %s139
      %p151 = scmp.eq.s32.totalorder %s29, 1
      %p152 = por %p150, %p151
      %p154 = scmp.ne.s32.totalorder %s139, %s153
      %p155 = scmp.eq.s32.totalorder %s29, 0
      %p156 = por %p154, %p155
      %s157 = ssub.s32 %s23, %s30
      %p158 = scmp.eq.s32.totalorder %s157, 0
      %s160 = sadd.s32 %s159, 1
      %s161 = scalar_select %p158, %s159, %s160
      %p164 = pneg %p158
      %p165 = scmp.eq.s32.totalorder %s23, 1
      %p166 = por %p164, %p165
      %p167 = scmp.ne.s32.totalorder %s159, %s162
      %p168 = scmp.eq.s32.totalorder %s23, 0
      %p169 = por %p167, %p168
      %p170 = scmp.ne.s32.totalorder %s159, %s162
      %p171 = scmp.eq.s32.totalorder %s28, 1
      %p172 = por %p170, %p171
      %p173 = scmp.ne.s32.totalorder %s162, %s163
      %p174 = scmp.eq.s32.totalorder %s28, 0
      %p175 = por %p173, %p174
      %p176 = scmp.ne.s32.totalorder %s162, %s163
      %p177 = scmp.eq.s32.totalorder %s29, 1
      %p178 = por %p176, %p177
      %p180 = scmp.ne.s32.totalorder %s163, %s179
      %p181 = scmp.eq.s32.totalorder %s29, 0
      %p182 = por %p180, %p181
      %s183 = ssub.s32 %s23, %s30
      %p184 = scmp.eq.s32.totalorder %s183, 0
      %s186 = sadd.s32 %s185, 1
      %s187 = scalar_select %p184, %s185, %s186
      %p190 = pneg %p184
      %p191 = scmp.eq.s32.totalorder %s23, 1
      %p192 = por %p190, %p191
      %p193 = scmp.ne.s32.totalorder %s185, %s188
      %p194 = scmp.eq.s32.totalorder %s23, 0
      %p195 = por %p193, %p194
      %p196 = scmp.ne.s32.totalorder %s185, %s188
      %p197 = scmp.eq.s32.totalorder %s28, 1
      %p198 = por %p196, %p197
      %p199 = scmp.ne.s32.totalorder %s188, %s189
      %p200 = scmp.eq.s32.totalorder %s28, 0
      %p201 = por %p199, %p200
      %p202 = scmp.ne.s32.totalorder %s188, %s189
      %p203 = scmp.eq.s32.totalorder %s29, 1
      %p204 = por %p202, %p203
      %p206 = scmp.ne.s32.totalorder %s189, %s205
      %p207 = scmp.eq.s32.totalorder %s29, 0
      %p208 = por %p206, %p207
      %s209 = ssub.s32 %s23, %s30
      %p210 = scmp.eq.s32.totalorder %s209, 0
      %s212 = sadd.s32 %s211, 1
      %s213 = scalar_select %p210, %s211, %s212
      %p216 = pneg %p210
      %p217 = scmp.eq.s32.totalorder %s23, 1
      %p218 = por %p216, %p217
      %p219 = scmp.ne.s32.totalorder %s211, %s214
      %p220 = scmp.eq.s32.totalorder %s23, 0
      %p221 = por %p219, %p220
      %p222 = scmp.ne.s32.totalorder %s211, %s214
      %p223 = scmp.eq.s32.totalorder %s28, 1
      %p224 = por %p222, %p223
      %p225 = scmp.ne.s32.totalorder %s214, %s215
      %p226 = scmp.eq.s32.totalorder %s28, 0
      %p227 = por %p225, %p226
      %p228 = scmp.ne.s32.totalorder %s214, %s215
      %p229 = scmp.eq.s32.totalorder %s29, 1
      %p230 = por %p228, %p229
      %p232 = scmp.ne.s32.totalorder %s215, %s231
      %p233 = scmp.eq.s32.totalorder %s29, 0
      %p234 = por %p232, %p233
      %s235 = ssub.s32 %s23, %s30
      %p236 = scmp.eq.s32.totalorder %s235, 0
      %s238 = sadd.s32 %s237, 1
      %s239 = scalar_select %p236, %s237, %s238
      %p242 = pneg %p236
      %p243 = scmp.eq.s32.totalorder %s23, 1
      %p244 = por %p242, %p243
      %p245 = scmp.ne.s32.totalorder %s237, %s240
      %p246 = scmp.eq.s32.totalorder %s23, 0
      %p247 = por %p245, %p246
      %p248 = scmp.ne.s32.totalorder %s237, %s240
      %p249 = scmp.eq.s32.totalorder %s28, 1
      %p250 = por %p248, %p249
      %p251 = scmp.ne.s32.totalorder %s240, %s241
      %p252 = scmp.eq.s32.totalorder %s28, 0
      %p253 = por %p251, %p252
      %p254 = scmp.ne.s32.totalorder %s240, %s241
      %p255 = scmp.eq.s32.totalorder %s29, 1
      %p256 = por %p254, %p255
      %p258 = scmp.ne.s32.totalorder %s241, %s257
      %p259 = scmp.eq.s32.totalorder %s29, 0
      %p260 = por %p258, %p259
      %s261 = ssub.s32 %s23, %s30
      %p262 = scmp.eq.s32.totalorder %s261, 0
      %s264 = sadd.s32 %s263, 1
      %s265 = scalar_select %p262, %s263, %s264
      %p268 = pneg %p262
      %p269 = scmp.eq.s32.totalorder %s23, 1
      %p270 = por %p268, %p269
      %p271 = scmp.ne.s32.totalorder %s263, %s266
      %p272 = scmp.eq.s32.totalorder %s23, 0
      %p273 = por %p271, %p272
      %p274 = scmp.ne.s32.totalorder %s263, %s266
      %p275 = scmp.eq.s32.totalorder %s28, 1
      %p276 = por %p274, %p275
      %p277 = scmp.ne.s32.totalorder %s266, %s267
      %p278 = scmp.eq.s32.totalorder %s28, 0
      %p279 = por %p277, %p278
      %p280 = scmp.ne.s32.totalorder %s266, %s267
      %p281 = scmp.eq.s32.totalorder %s29, 1
      %p282 = por %p280, %p281
      %p284 = scmp.ne.s32.totalorder %s267, %s283
      %p285 = scmp.eq.s32.totalorder %s29, 0
      %p286 = por %p284, %p285
      %s287 = ssub.s32 %s23, %s30
      %p288 = scmp.eq.s32.totalorder %s287, 0
      %s290 = sadd.s32 %s289, 1
      %s291 = scalar_select %p288, %s289, %s290
      %p294 = pneg %p288
      %p295 = scmp.eq.s32.totalorder %s23, 1
      %p296 = por %p294, %p295
      %p297 = scmp.ne.s32.totalorder %s289, %s292
      %p298 = scmp.eq.s32.totalorder %s23, 0
      %p299 = por %p297, %p298
      %p300 = scmp.ne.s32.totalorder %s289, %s292
      %p301 = scmp.eq.s32.totalorder %s28, 1
      %p302 = por %p300, %p301
      %p303 = scmp.ne.s32.totalorder %s292, %s293
      %p304 = scmp.eq.s32.totalorder %s28, 0
      %p305 = por %p303, %p304
      %p306 = scmp.ne.s32.totalorder %s292, %s293
      %p307 = scmp.eq.s32.totalorder %s29, 1
      %p308 = por %p306, %p307
      %p310 = scmp.ne.s32.totalorder %s293, %s309
      %p311 = scmp.eq.s32.totalorder %s29, 0
      %p312 = por %p310, %p311
      %s313 = ssub.s32 %s23, %s30
      %p314 = scmp.eq.s32.totalorder %s313, 0
      %s316 = sadd.s32 %s315, 1
      %s317 = scalar_select %p314, %s315, %s316
      %p320 = pneg %p314
      %p321 = scmp.eq.s32.totalorder %s23, 1
      %p322 = por %p320, %p321
      %p323 = scmp.ne.s32.totalorder %s315, %s318
      %p324 = scmp.eq.s32.totalorder %s23, 0
      %p325 = por %p323, %p324
      %p326 = scmp.ne.s32.totalorder %s315, %s318
      %p327 = scmp.eq.s32.totalorder %s28, 1
      %p328 = por %p326, %p327
      %p329 = scmp.ne.s32.totalorder %s318, %s319
      %p330 = scmp.eq.s32.totalorder %s28, 0
      %p331 = por %p329, %p330
      %p332 = scmp.ne.s32.totalorder %s318, %s319
      %p333 = scmp.eq.s32.totalorder %s29, 1
      %p334 = por %p332, %p333
      %p336 = scmp.ne.s32.totalorder %s319, %s335
      %p337 = scmp.eq.s32.totalorder %s29, 0
      %p338 = por %p336, %p337
      %s339 = ssub.s32 %s23, %s30
      %p340 = scmp.eq.s32.totalorder %s339, 0
      %s342 = sadd.s32 %s341, 1
      %s343 = scalar_select %p340, %s341, %s342
      %p346 = pneg %p340
      %p347 = scmp.eq.s32.totalorder %s23, 1
      %p348 = por %p346, %p347
      %p349 = scmp.ne.s32.totalorder %s341, %s344
      %p350 = scmp.eq.s32.totalorder %s23, 0
      %p351 = por %p349, %p350
      %p352 = scmp.ne.s32.totalorder %s341, %s344
      %p353 = scmp.eq.s32.totalorder %s28, 1
      %p354 = por %p352, %p353
      %p355 = scmp.ne.s32.totalorder %s344, %s345
      %p356 = scmp.eq.s32.totalorder %s28, 0
      %p357 = por %p355, %p356
      %p358 = scmp.ne.s32.totalorder %s344, %s345
      %p359 = scmp.eq.s32.totalorder %s29, 1
      %p360 = por %p358, %p359
      %p362 = scmp.ne.s32.totalorder %s345, %s361
      %p363 = scmp.eq.s32.totalorder %s29, 0
      %p364 = por %p362, %p363
      %s366 = sadd.s32 %s365, 1
      %p369 = scmp.eq.s32.totalorder %s23, 1
      %p370 = scmp.ne.s32.totalorder %s365, %s367
      %p371 = scmp.eq.s32.totalorder %s23, 0
      %p372 = por %p370, %p371
      %p373 = scmp.ne.s32.totalorder %s365, %s367
      %p374 = scmp.eq.s32.totalorder %s28, 1
      %p375 = por %p373, %p374
      %p376 = scmp.ne.s32.totalorder %s367, %s368
      %p377 = scmp.eq.s32.totalorder %s28, 0
      %p378 = por %p376, %p377
      %p379 = scmp.ne.s32.totalorder %s367, %s368
      %p380 = scmp.eq.s32.totalorder %s29, 1
      %p381 = por %p379, %p380
      %p383 = scmp.ne.s32.totalorder %s368, %s382
      %p384 = scmp.eq.s32.totalorder %s29, 0
      %p385 = por %p383, %p384
      %s387 = sadd.s32 %s386, 1
      %p390 = scmp.eq.s32.totalorder %s23, 1
      %p391 = scmp.ne.s32.totalorder %s386, %s388
      %p392 = scmp.eq.s32.totalorder %s23, 0
      %p393 = por %p391, %p392
      %p394 = scmp.ne.s32.totalorder %s386, %s388
      %p395 = scmp.eq.s32.totalorder %s28, 1
      %p396 = por %p394, %p395
      %p397 = scmp.ne.s32.totalorder %s388, %s389
      %p398 = scmp.eq.s32.totalorder %s28, 0
      %p399 = por %p397, %p398
      %p400 = scmp.ne.s32.totalorder %s388, %s389
      %p401 = scmp.eq.s32.totalorder %s29, 1
      %p402 = por %p400, %p401
      %p404 = scmp.ne.s32.totalorder %s389, %s403
      %p405 = scmp.eq.s32.totalorder %s29, 0
      %p406 = por %p404, %p405
      %p407 = scmp.le.s32.totalorder 1, %s23
      %p408 = scmp.lt.s32.totalorder %s23, 3
      %p409 = pnand %p407, %p408
      %p410 = pneg %p409
      // Predicated region
      $region9: #{layered_gated_gcn_pallas.1} parent=5 // pred_check
        _
      $region10: #{layered_gated_gcn_pallas.1} parent=5 // pred_check_branch
        %412 = sbr.rel (%p409) target = $region12
      $region11: #{layered_gated_gcn_pallas.1} parent=5 // pred_region
        %s413 = ssub.s32 %s23, 1
        // Predicated region
        $region13: #{layered_gated_gcn_pallas.1} parent=11 // pred_check
          %p414 = pneg %p44
        $region14: #{layered_gated_gcn_pallas.1} parent=11 // pred_check_branch
          %416 = sbr.rel (%p414) target = $region16
        $region15: #{layered_gated_gcn_pallas.1} parent=11 // pred_region
          _
        $region16: #{layered_gated_gcn_pallas.1} parent=11 // pred_fallthru
          _
        // Predicated region
        $region17: #{layered_gated_gcn_pallas.1} parent=11 // pred_check
          %p417 = pneg %p65
        $region18: #{layered_gated_gcn_pallas.1} parent=11 // pred_check_branch
          %419 = sbr.rel (%p417) target = $region20
        $region19: #{layered_gated_gcn_pallas.1} parent=11 // pred_region
          _
        $region20: #{layered_gated_gcn_pallas.1} parent=11 // pred_fallthru
          _
        // Predicated region
        $region21: #{layered_gated_gcn_pallas.1} parent=11 // pred_check
          %p420 = pneg %p86
        $region22: #{layered_gated_gcn_pallas.1} parent=11 // pred_check_branch
          %422 = sbr.rel (%p420) target = $region24
        $region23: #{layered_gated_gcn_pallas.1} parent=11 // pred_region
          _
        $region24: #{layered_gated_gcn_pallas.1} parent=11 // pred_fallthru
          _
        // Predicated region
        $region25: #{layered_gated_gcn_pallas.1} parent=11 // pred_check
          %p423 = pneg %p107
        $region26: #{layered_gated_gcn_pallas.1} parent=11 // pred_check_branch
          %425 = sbr.rel (%p423) target = $region28
        $region27: #{layered_gated_gcn_pallas.1} parent=11 // pred_region
          _
        $region28: #{layered_gated_gcn_pallas.1} parent=11 // pred_fallthru
          _
        // Predicated region
        $region29: #{layered_gated_gcn_pallas.1} parent=11 // pred_check
          %p426 = pneg %p128
        $region30: #{layered_gated_gcn_pallas.1} parent=11 // pred_check_branch
          %428 = sbr.rel (%p426) target = $region32
        $region31: #{layered_gated_gcn_pallas.1} parent=11 // pred_region
          _
        $region32: #{layered_gated_gcn_pallas.1} parent=11 // pred_fallthru
          _
        // Predicated region
        $region33: #{layered_gated_gcn_pallas.1} parent=11 // pred_check
          %p429 = pneg %p149
        $region34: #{layered_gated_gcn_pallas.1} parent=11 // pred_check_branch
          %431 = sbr.rel (%p429) target = $region36
        $region35: #{layered_gated_gcn_pallas.1} parent=11 // pred_region
          _
        $region36: #{layered_gated_gcn_pallas.1} parent=11 // pred_fallthru
          _
      $region12: #{layered_gated_gcn_pallas.1} parent=5 // pred_fallthru
        _
      %p432 = scmp.lt.s32.totalorder %s23, 2
      // Predicated region
      $region37: #{layered_gated_gcn_pallas.1} parent=5 // pred_check
        %p433 = pneg %p432
      $region38: #{layered_gated_gcn_pallas.1} parent=5 // pred_check_branch
        %435 = sbr.rel (%p433) target = $region40
      $region39: #{layered_gated_gcn_pallas.1} parent=5 // pred_region
        // Predicated region
        $region41: #{layered_gated_gcn_pallas.1} parent=39 // pred_check
          %p436 = pneg %p169
        $region42: #{layered_gated_gcn_pallas.1} parent=39 // pred_check_branch
          %438 = sbr.rel (%p436) target = $region44
        $region43: #{layered_gated_gcn_pallas.1} parent=39 // pred_region
          %p439 = scmp.lt.s32.totalorder %s23, 1
          %s440 = scalar_select %p439, %s23, 1
          %s441 = smul.addr %s440, 8
          %s442 = smul.addr %s441, 4
          %s443 = scalar_lea.vmem %s6, %s442
        $region44: #{layered_gated_gcn_pallas.1} parent=39 // pred_fallthru
          _
        // Predicated region
        $region45: #{layered_gated_gcn_pallas.1} parent=39 // pred_check
          %p444 = pneg %p195
        $region46: #{layered_gated_gcn_pallas.1} parent=39 // pred_check_branch
          %446 = sbr.rel (%p444) target = $region48
        $region47: #{layered_gated_gcn_pallas.1} parent=39 // pred_region
          %p447 = scmp.lt.s32.totalorder %s23, 1
          %s448 = scalar_select %p447, %s23, 1
          %s449 = smul.addr %s448, 2
          %s450 = scalar_lea.vmem %s7, %s449
        $region48: #{layered_gated_gcn_pallas.1} parent=39 // pred_fallthru
          _
        // Predicated region
        $region49: #{layered_gated_gcn_pallas.1} parent=39 // pred_check
          %p451 = pneg %p221
        $region50: #{layered_gated_gcn_pallas.1} parent=39 // pred_check_branch
          %453 = sbr.rel (%p451) target = $region52
        $region51: #{layered_gated_gcn_pallas.1} parent=39 // pred_region
          %p454 = scmp.lt.s32.totalorder %s23, 1
          %s455 = scalar_select %p454, %s23, 1
          %s456 = smul.addr %s455, 4
          %s457 = smul.addr %s456, 4
          %s458 = scalar_lea.vmem %s8, %s457
        $region52: #{layered_gated_gcn_pallas.1} parent=39 // pred_fallthru
          _
        // Predicated region
        $region53: #{layered_gated_gcn_pallas.1} parent=39 // pred_check
          %p459 = pneg %p247
        $region54: #{layered_gated_gcn_pallas.1} parent=39 // pred_check_branch
          %461 = sbr.rel (%p459) target = $region56
        $region55: #{layered_gated_gcn_pallas.1} parent=39 // pred_region
          %p462 = scmp.lt.s32.totalorder %s23, 1
          %s463 = scalar_select %p462, %s23, 1
          %s464 = scalar_lea.vmem %s9, %s463
        $region56: #{layered_gated_gcn_pallas.1} parent=39 // pred_fallthru
          _
        // Predicated region
        $region57: #{layered_gated_gcn_pallas.1} parent=39 // pred_check
          %p465 = pneg %p273
        $region58: #{layered_gated_gcn_pallas.1} parent=39 // pred_check_branch
          %467 = sbr.rel (%p465) target = $region60
        $region59: #{layered_gated_gcn_pallas.1} parent=39 // pred_region
          %p468 = scmp.lt.s32.totalorder %s23, 1
          %s469 = scalar_select %p468, %s23, 1
          %s470 = scalar_lea.vmem %s10, %s469
        $region60: #{layered_gated_gcn_pallas.1} parent=39 // pred_fallthru
          _
        // Predicated region
        $region61: #{layered_gated_gcn_pallas.1} parent=39 // pred_check
          %p471 = pneg %p299
        $region62: #{layered_gated_gcn_pallas.1} parent=39 // pred_check_branch
          %473 = sbr.rel (%p471) target = $region64
        $region63: #{layered_gated_gcn_pallas.1} parent=39 // pred_region
          %p474 = scmp.lt.s32.totalorder %s23, 1
          %s475 = scalar_select %p474, %s23, 1
          %s476 = scalar_lea.vmem %s11, %s475
        $region64: #{layered_gated_gcn_pallas.1} parent=39 // pred_fallthru
          _
        // Predicated region
        $region65: #{layered_gated_gcn_pallas.1} parent=39 // pred_check
          %p477 = pneg %p325
        $region66: #{layered_gated_gcn_pallas.1} parent=39 // pred_check_branch
          %479 = sbr.rel (%p477) target = $region68
        $region67: #{layered_gated_gcn_pallas.1} parent=39 // pred_region
          %p480 = scmp.lt.s32.totalorder %s23, 1
          %s481 = scalar_select %p480, %s23, 1
          %s482 = scalar_lea.vmem %s12, %s481
        $region68: #{layered_gated_gcn_pallas.1} parent=39 // pred_fallthru
          _
        // Predicated region
        $region69: #{layered_gated_gcn_pallas.1} parent=39 // pred_check
          %p483 = pneg %p351
        $region70: #{layered_gated_gcn_pallas.1} parent=39 // pred_check_branch
          %485 = sbr.rel (%p483) target = $region72
        $region71: #{layered_gated_gcn_pallas.1} parent=39 // pred_region
          %p486 = scmp.lt.s32.totalorder %s23, 1
          %s487 = scalar_select %p486, %s23, 1
          %s488 = scalar_lea.vmem %s13, %s487
        $region72: #{layered_gated_gcn_pallas.1} parent=39 // pred_fallthru
          _
      $region40: #{layered_gated_gcn_pallas.1} parent=5 // pred_fallthru
        _
      %p489 = scmp.le.s32.totalorder 1, %s23
      %p490 = scmp.lt.s32.totalorder %s23, 3
      %p491 = pnand %p489, %p490
      %p492 = pneg %p491
      // Predicated region
      $region73: #{layered_gated_gcn_pallas.1} parent=5 // pred_check
        _
      $region74: #{layered_gated_gcn_pallas.1} parent=5 // pred_check_branch
        %494 = sbr.rel (%p491) target = $region76
      $region75: #{layered_gated_gcn_pallas.1} parent=5 // pred_region
        %s495 = ssub.s32 %s23, 1
        %p496 = pneg %p44
        %p497 = pneg %p41
        %p498 = pneg %p65
        %p499 = pneg %p62
        %p500 = pneg %p86
        %p501 = pneg %p83
        %p502 = pneg %p107
        %p503 = pneg %p104
        %p504 = pneg %p128
        %p505 = pneg %p125
        %p506 = pneg %p149
        %p507 = pneg %p146
        %p508 = scmp.lt.s32.totalorder %s28, 1
        %s509 = scalar_select %p508, %s28, 1
        %s510 = smul.addr %s509, 8
        %s511 = smul.addr %s510, 4
        %s512 = scalar_lea.vmem %s6, %s511
        %p513 = pneg %p175
        %p514 = pneg %p172
        %p515 = scmp.lt.s32.totalorder %s28, 1
        %s516 = scalar_select %p515, %s28, 1
        %s517 = smul.addr %s516, 2
        %s518 = scalar_lea.vmem %s7, %s517
        %p519 = pneg %p201
        %p520 = pneg %p198
        %p521 = scmp.lt.s32.totalorder %s28, 1
        %s522 = scalar_select %p521, %s28, 1
        %s523 = smul.addr %s522, 4
        %s524 = smul.addr %s523, 4
        %s525 = scalar_lea.vmem %s8, %s524
        %p526 = pneg %p227
        %p527 = pneg %p224
        %p528 = scmp.lt.s32.totalorder %s28, 1
        %s529 = scalar_select %p528, %s28, 1
        %s530 = scalar_lea.vmem %s9, %s529
        %p531 = pneg %p253
        %p532 = pneg %p250
        %p533 = scmp.lt.s32.totalorder %s28, 1
        %s534 = scalar_select %p533, %s28, 1
        %s535 = scalar_lea.vmem %s10, %s534
        %p536 = pneg %p279
        %p537 = pneg %p276
        %p538 = scmp.lt.s32.totalorder %s28, 1
        %s539 = scalar_select %p538, %s28, 1
        %s540 = scalar_lea.vmem %s11, %s539
        %p541 = pneg %p305
        %p542 = pneg %p302
        %p543 = scmp.lt.s32.totalorder %s28, 1
        %s544 = scalar_select %p543, %s28, 1
        %s545 = scalar_lea.vmem %s12, %s544
        %p546 = pneg %p331
        %p547 = pneg %p328
        %p548 = scmp.lt.s32.totalorder %s28, 1
        %s549 = scalar_select %p548, %s28, 1
        %s550 = scalar_lea.vmem %s13, %s549
        %p551 = pneg %p357
        %p552 = pneg %p354
        %p553 = pneg %p378
        %p554 = pneg %p375
        %p555 = pneg %p399
        %p556 = pneg %p396
        %p557 = scmp.lt.s32.totalorder %s28, 1
        %s558 = scalar_select %p557, %s28, 1
        %s559 = smul.addr %s558, 8
        %s560 = smul.addr %s559, 4
        %s561 = scalar_lea.vmem %s6, %s560
        %p562 = scmp.lt.s32.totalorder %s28, 1
        %s563 = scalar_select %p562, %s28, 1
        %s564 = smul.addr %s563, 2
        %s565 = scalar_lea.vmem %s7, %s564
        %p566 = scmp.lt.s32.totalorder %s28, 1
        %s567 = scalar_select %p566, %s28, 1
        %s568 = smul.addr %s567, 4
        %s569 = smul.addr %s568, 4
        %s570 = scalar_lea.vmem %s8, %s569
        %p571 = scmp.lt.s32.totalorder %s28, 1
        %s572 = scalar_select %p571, %s28, 1
        %s573 = scalar_lea.vmem %s9, %s572
        %p574 = scmp.lt.s32.totalorder %s28, 1
        %s575 = scalar_select %p574, %s28, 1
        %s576 = scalar_lea.vmem %s10, %s575
        %p577 = scmp.lt.s32.totalorder %s28, 1
        %s578 = scalar_select %p577, %s28, 1
        %s579 = scalar_lea.vmem %s11, %s578
        %p580 = scmp.lt.s32.totalorder %s28, 1
        %s581 = scalar_select %p580, %s28, 1
        %s582 = scalar_lea.vmem %s12, %s581
        %p583 = scmp.lt.s32.totalorder %s28, 1
        %s584 = scalar_select %p583, %s28, 1
        %s585 = scalar_lea.vmem %s13, %s584
        %p587 = scmp.eq.s32.totalorder %s28, 0
        // Predicated region
        $region77: #{layered_gated_gcn_pallas.1} parent=75 // pred_check
          %p588 = pneg %p587
        $region78: #{layered_gated_gcn_pallas.1} parent=75 // pred_check_branch
          %590 = sbr.rel (%p588) target = $region80
        $region79: #{layered_gated_gcn_pallas.1} parent=75 // pred_region
          %v591 = vld [vmem:[%s0] sm:$0xff]
          %v592 = vld [vmem:[%s0 + $0x8] sm:$0xff]
          %vm593 = vcmask 261120
          %594 = vst.msk [vmem:[#allocation6] sm:$0xff] %vm593, %v591
          %595 = vst.msk [vmem:[#allocation6 + $0x8] sm:$0xff] %vm593, %v592
          %v596 = vld [vmem:[%s1] sm:$0xff]
          %v597 = vld [vmem:[%s1 + $0x8] sm:$0xff]
          %v598 = vld [vmem:[%s1 + $0x10] sm:$0xff]
          %v599 = vld [vmem:[%s1 + $0x18] sm:$0xff]
          %v600 = vld [vmem:[%s1 + $0x20] sm:$0xff]
          %v601 = vld [vmem:[%s1 + $0x28] sm:$0xff]
          %602 = vst.msk [vmem:[%s15] sm:$0xff] %vm593, %v596
          %603 = vst.msk [vmem:[%s15 + $0x8] sm:$0xff] %vm593, %v597
          %604 = vst.msk [vmem:[%s15 + $0x10] sm:$0xff] %vm593, %v598
          %605 = vst.msk [vmem:[%s15 + $0x18] sm:$0xff] %vm593, %v599
          %606 = vst.msk [vmem:[%s15 + $0x20] sm:$0xff] %vm593, %v600
          %607 = vst.msk [vmem:[%s15 + $0x28] sm:$0xff] %vm593, %v601
          %v608 = vlaneseq
          %v609 = vand.u32 %v608, 127
          %v610 = vlaneseq
          %v611 = vshrl.u32 %v610, 7
          %v612 = vadd.s32 %v611, 8
          %v613 = vld [vmem:[%s2] sm:$0xff]
          %v614 = vld [vmem:[%s2 + $0x8] sm:$0xff]
          %v615 = vld [vmem:[%s2 + $0x10] sm:$0xff]
          %v616 = vld [vmem:[%s2 + $0x18] sm:$0xff]
          %v617 = vld [vmem:[%s2 + $0x20] sm:$0xff]
          %v618 = vld [vmem:[%s2 + $0x28] sm:$0xff]
          %619 = vset.pattern.permute.xlu0 0
          %620 = vperm.xlu0 %619, %v613
          %v621 = vpop.permute.xlu0 %620
          %622 = vset.pattern.permute.xlu0 0
          %623 = vperm.xlu0 %622, %v614
          %v624 = vpop.permute.xlu0 %623
          %625 = vset.pattern.permute.xlu0 0
          %626 = vperm.xlu0 %625, %v615
          %v627 = vpop.permute.xlu0 %626
          %628 = vset.pattern.permute.xlu0 0
          %629 = vperm.xlu0 %628, %v616
          %v630 = vpop.permute.xlu0 %629
          %631 = vset.pattern.permute.xlu0 0
          %632 = vperm.xlu0 %631, %v617
          %v633 = vpop.permute.xlu0 %632
          %634 = vset.pattern.permute.xlu0 0
          %635 = vperm.xlu0 %634, %v618
          %v636 = vpop.permute.xlu0 %635
          %vm637 = vcmp.eq.s32.totalorder %v609, %v621
          %vm638 = vcmp.eq.s32.totalorder %v609, %v624
          %vm639 = vcmp.eq.s32.totalorder %v609, %v627
          %vm640 = vcmp.eq.s32.totalorder %v609, %v630
          %vm641 = vcmp.eq.s32.totalorder %v609, %v633
          %vm642 = vcmp.eq.s32.totalorder %v609, %v636
          %v643 = vsel %vm637, 1.0, 0.0
          %v644 = vsel %vm638, 1.0, 0.0
          %v645 = vsel %vm639, 1.0, 0.0
          %v646 = vsel %vm640, 1.0, 0.0
          %v647 = vsel %vm641, 1.0, 0.0
          %v648 = vsel %vm642, 1.0, 0.0
          %v649 = vpack.c.bf16 %v644, %v643
          %v650 = vpack.c.bf16 %v646, %v645
          %v651 = vpack.c.bf16 %v648, %v647
          %v655 = vunpack.c.l.b16 %v649
          %v656 = vunpack.c.h.b16 %v649
          %v657 = vunpack.c.l.b16 %v650
          %v658 = vunpack.c.h.b16 %v650
          %v659 = vunpack.c.l.b16 %v651
          %v660 = vunpack.c.h.b16 %v651
          %v661 = vpack.c.b16 %v655, %v655
          %v662 = vpack.c.b16 %v656, %v656
          %v663 = vpack.c.b16 %v657, %v657
          %v664 = vpack.c.b16 %v658, %v658
          %v665 = vpack.c.b16 %v659, %v659
          %v666 = vpack.c.b16 %v660, %v660
          %vm673 = vcmask 125952
          %674 = vst.msk [vmem:[#allocation2] sm:$0xf] %vm673, %v661
          %675 = vst.msk [vmem:[#allocation2 + $0x4] sm:$0xf] %vm673, %v662
          %676 = vst.msk [vmem:[#allocation2 + $0x8] sm:$0xf] %vm673, %v663
          %677 = vst.msk [vmem:[#allocation2 + $0xc] sm:$0xf] %vm673, %v664
          %678 = vst.msk [vmem:[#allocation2 + $0x10] sm:$0xf] %vm673, %v665
          %679 = vst.msk [vmem:[#allocation2 + $0x14] sm:$0xf] %vm673, %v666
          %v680 = vld [vmem:[%s3] sm:$0xff]
          %v681 = vld [vmem:[%s3 + $0x8] sm:$0xff]
          %v682 = vld [vmem:[%s3 + $0x10] sm:$0xff]
          %v683 = vld [vmem:[%s3 + $0x18] sm:$0xff]
          %v684 = vld [vmem:[%s3 + $0x20] sm:$0xff]
          %v685 = vld [vmem:[%s3 + $0x28] sm:$0xff]
          %686 = vset.pattern.permute.xlu0 0
          %687 = vperm.xlu0 %686, %v680
          %v688 = vpop.permute.xlu0 %687
          %689 = vset.pattern.permute.xlu0 0
          %690 = vperm.xlu0 %689, %v681
          %v691 = vpop.permute.xlu0 %690
          %692 = vset.pattern.permute.xlu0 0
          %693 = vperm.xlu0 %692, %v682
          %v694 = vpop.permute.xlu0 %693
          %695 = vset.pattern.permute.xlu0 0
          %696 = vperm.xlu0 %695, %v683
          %v697 = vpop.permute.xlu0 %696
          %698 = vset.pattern.permute.xlu0 0
          %699 = vperm.xlu0 %698, %v684
          %v700 = vpop.permute.xlu0 %699
          %701 = vset.pattern.permute.xlu0 0
          %702 = vperm.xlu0 %701, %v685
          %v703 = vpop.permute.xlu0 %702
          %vm704 = vcmp.eq.s32.totalorder %v609, %v688
          %vm705 = vcmp.eq.s32.totalorder %v609, %v691
          %vm706 = vcmp.eq.s32.totalorder %v609, %v694
          %vm707 = vcmp.eq.s32.totalorder %v609, %v697
          %vm708 = vcmp.eq.s32.totalorder %v609, %v700
          %vm709 = vcmp.eq.s32.totalorder %v609, %v703
          %v710 = vsel %vm704, 1.0, 0.0
          %v711 = vsel %vm705, 1.0, 0.0
          %v712 = vsel %vm706, 1.0, 0.0
          %v713 = vsel %vm707, 1.0, 0.0
          %v714 = vsel %vm708, 1.0, 0.0
          %v715 = vsel %vm709, 1.0, 0.0
          %v716 = vpack.c.bf16 %v711, %v710
          %v717 = vpack.c.bf16 %v713, %v712
          %v718 = vpack.c.bf16 %v715, %v714
          %v722 = vunpack.c.l.b16 %v716
          %v723 = vunpack.c.h.b16 %v716
          %v724 = vunpack.c.l.b16 %v717
          %v725 = vunpack.c.h.b16 %v717
          %v726 = vunpack.c.l.b16 %v718
          %v727 = vunpack.c.h.b16 %v718
          %v728 = vpack.c.b16 %v722, %v722
          %v729 = vpack.c.b16 %v723, %v723
          %v730 = vpack.c.b16 %v724, %v724
          %v731 = vpack.c.b16 %v725, %v725
          %v732 = vpack.c.b16 %v726, %v726
          %v733 = vpack.c.b16 %v727, %v727
          %740 = vst.msk [vmem:[#allocation3] sm:$0xf] %vm673, %v728
          %741 = vst.msk [vmem:[#allocation3 + $0x4] sm:$0xf] %vm673, %v729
          %742 = vst.msk [vmem:[#allocation3 + $0x8] sm:$0xf] %vm673, %v730
          %743 = vst.msk [vmem:[#allocation3 + $0xc] sm:$0xf] %vm673, %v731
          %744 = vst.msk [vmem:[#allocation3 + $0x10] sm:$0xf] %vm673, %v732
          %745 = vst.msk [vmem:[#allocation3 + $0x14] sm:$0xf] %vm673, %v733
          %v746 = vld [vmem:[%s4] sm:$0x1]
          %v747 = vlaneseq
          %v748 = vshrl.u32 %v747, 7
          %v749 = vsub.s32 0, %v748
          %v750 = vrot.slane %v746, %v749
          %vm751 = vcmp.eq.s32.totalorder %v611, %v750
          %vm752 = vcmp.eq.s32.totalorder %v612, %v750
          %v753 = vsel %vm751, 1.0, 0.0
          %v754 = vsel %vm752, 1.0, 0.0
          %v755 = vpack.c.bf16 %v754, %v753
          %v757 = vunpack.c.l.b16 %v755
          %v758 = vunpack.c.h.b16 %v755
          %v759 = vpack.c.b16 %v757, %v757
          %v760 = vpack.c.b16 %v758, %v758
          %vm763 = vcmask 388096
          %764 = vst.msk [vmem:[#allocation4] sm:$0xf] %vm763, %v759
          %765 = vst.msk [vmem:[#allocation4 + $0x4] sm:$0xf] %vm763, %v760
          %v766 = vld [vmem:[%s5] sm:$0x1]
          %v767 = vlaneseq
          %v768 = vshrl.u32 %v767, 7
          %v769 = vsub.s32 0, %v768
          %v770 = vrot.slane %v766, %v769
          %vm771 = vcmp.eq.s32.totalorder %v611, %v770
          %vm772 = vcmp.eq.s32.totalorder %v612, %v770
          %v773 = vsel %vm771, 1.0, 0.0
          %v774 = vsel %vm772, 1.0, 0.0
          %v775 = vpack.c.bf16 %v774, %v773
          %v777 = vunpack.c.l.b16 %v775
          %v778 = vunpack.c.h.b16 %v775
          %v779 = vpack.c.b16 %v777, %v777
          %v780 = vpack.c.b16 %v778, %v778
          %783 = vst.msk [vmem:[#allocation5] sm:$0xf] %vm763, %v779
          %784 = vst.msk [vmem:[#allocation5 + $0x4] sm:$0xf] %vm763, %v780
        $region80: #{layered_gated_gcn_pallas.1} parent=75 // pred_fallthru
          _
        %v785 = vld [vmem:[#allocation6] sm:$0xff]
        %v786 = vld [vmem:[#allocation6 + $0x8] sm:$0xff]
        %v787 = vld [vmem:[%s15] sm:$0xff]
        %v788 = vld [vmem:[%s15 + $0x8] sm:$0xff]
        %v789 = vld [vmem:[%s15 + $0x10] sm:$0xff]
        %v790 = vld [vmem:[%s15 + $0x18] sm:$0xff]
        %v791 = vld [vmem:[%s15 + $0x20] sm:$0xff]
        %v792 = vld [vmem:[%s15 + $0x28] sm:$0xff]
        %v793 = vpack.c.bf16 %v786, %v785
        %v794 = vld [vmem:[%s561] sm:$0xff]
        %v795 = vld [vmem:[%s561 + $0x8] sm:$0xff]
        %v796 = vld [vmem:[%s561 + $0x10] sm:$0xff]
        %v797 = vld [vmem:[%s561 + $0x18] sm:$0xff]
        %v798 = vld [vmem:[%s565] sm:$0x3]
        %v800 = vlaneseq
        %v801 = vshrl.u32 %v800, 7
        %v802 = vsub.s32 0, %v801
        %v803 = vrot.slane %v798, %v802
        %v804 = vlaneseq
        %v805 = vshrl.u32 %v804, 7
        %v806 = vsub.s32 1, %v805
        %v807 = vrot.slane %v798, %v806
        %v814 = vunpack.c.l.b16 %v794
        %v815 = vunpack.c.h.b16 %v794
        %v816 = vunpack.c.l.b16 %v795
        %v817 = vunpack.c.h.b16 %v795
        %v818 = vunpack.c.l.b16 %v796
        %v819 = vunpack.c.h.b16 %v796
        %v820 = vunpack.c.l.b16 %v797
        %v821 = vunpack.c.h.b16 %v797
        %v822 = vpack.c.b16 %v816, %v814
        %v823 = vpack.c.b16 %v817, %v815
        %v824 = vpack.c.b16 %v820, %v818
        %v825 = vpack.c.b16 %v821, %v819
        %vm830 = vcmask 261120
        %v832 = vsel %vm830, %v793, 0
        %834 = vmatprep.subr.bf16.mxu0 0
        %835 = vmatpush1.bf16.msra.mxu0 0
        %836 = vmatprep.subr.bf16.mxu0 0
        %837 = vmatpush1.bf16.msra.mxu0 0
        %838 = vmatprep.subr.bf16.mxu0 0
        %839 = vmatpush1.bf16.msra.mxu0 0
        %840 = vmatprep.subr.bf16.mxu0 0
        %841 = vmatpush1.bf16.msra.mxu0 0
        %842 = vmatprep.subr.bf16.mxu0 0
        %843 = vmatpush1.bf16.msra.mxu0 0
        %844 = vmatprep.subr.bf16.mxu0 0
        %845 = vmatpush1.bf16.msra.mxu0 0
        %846 = vmatprep.subr.bf16.mxu0 %v825
        %847 = vmatpush1.bf16.msra.mxu0 %v824
        %848 = vmatprep.subr.bf16.mxu0 %v823
        %849 = vmatpush1.bf16.msra.mxu0 %v822
        %850 = vmatprep.subr.bf16.mxu0 0
        %851 = vmatpush2.bf16.msra.mxu0 0
        %852 = vmatprep.subr.bf16.mxu0 0
        %853 = vmatpush2.bf16.msra.mxu0 0
        %854 = vmatprep.subr.bf16.mxu0 0
        %855 = vmatpush2.bf16.msra.mxu0 0
        %856 = vmatprep.subr.bf16.mxu0 0
        %857 = vmatpush2.bf16.msra.mxu0 0
        %858 = vmatprep.subr.bf16.mxu0 0
        %859 = vmatpush2.bf16.msra.mxu0 0
        %860 = vmatprep.subr.bf16.mxu0 0
        %861 = vmatpush2.bf16.msra.mxu0 0
        %862 = vmatprep.subr.bf16.mxu0 0
        %863 = vmatpush2.bf16.msra.mxu0 0
        %864 = vmatprep.subr.bf16.mxu0 0
        %865 = vmatpush2.bf16.msra.mxu0 0
        %866 = vmatprep.mubr.bf16.mxu0 0
        %867 = vmatmul.mubr.bf16.gmra.mxu0 %v832
        %v868 = vpop.f32.mrf.mxu0
        %v869 = vadd.f32 %v803, %v868
        %v870 = vpop.f32.mrf.mxu0
        %v871 = vadd.f32 %v807, %v870
        %v872 = vpop.f32.mrf.mxu0
        %v873 = vadd.f32 %v803, %v872
        %v874 = vpop.f32.mrf.mxu0
        %v875 = vadd.f32 %v807, %v874
        %876 = vdwg.mxu0
        %v877 = vpack.c.bf16 %v788, %v787
        %v878 = vpack.c.bf16 %v790, %v789
        %v879 = vpack.c.bf16 %v792, %v791
        %v880 = vld [vmem:[%s570] sm:$0xf]
        %v881 = vld [vmem:[%s570 + $0x4] sm:$0xf]
        %v882 = vld [vmem:[%s570 + $0x8] sm:$0xf]
        %v883 = vld [vmem:[%s570 + $0xc] sm:$0xf]
        %v884 = vld [vmem:[%s573] sm:$0x1]
        %v886 = vlaneseq
        %v887 = vshrl.u32 %v886, 7
        %v888 = vsub.s32 0, %v887
        %v889 = vrot.slane %v884, %v888
        %v895 = vunpack.c.l.b16 %v880
        %v896 = vunpack.c.l.b16 %v881
        %v897 = vunpack.c.l.b16 %v882
        %v898 = vunpack.c.l.b16 %v883
        %v899 = vpack.c.b16 %v896, %v895
        %v900 = vpack.c.b16 %v898, %v897
        %v904 = vsel %vm830, %v877, 0
        %v907 = vsel %vm830, %v878, 0
        %v910 = vsel %vm830, %v879, 0
        %912 = vmatprep.subr.bf16.mxu0 0
        %913 = vmatpush1.bf16.msra.mxu0 0
        %914 = vmatprep.subr.bf16.mxu0 0
        %915 = vmatpush1.bf16.msra.mxu0 0
        %916 = vmatprep.subr.bf16.mxu0 0
        %917 = vmatpush1.bf16.msra.mxu0 0
        %918 = vmatprep.subr.bf16.mxu0 0
        %919 = vmatpush1.bf16.msra.mxu0 0
        %920 = vmatprep.subr.bf16.mxu0 0
        %921 = vmatpush1.bf16.msra.mxu0 0
        %922 = vmatprep.subr.bf16.mxu0 0
        %923 = vmatpush1.bf16.msra.mxu0 0
        %924 = vmatprep.subr.bf16.mxu0 0
        %925 = vmatpush1.bf16.msra.mxu0 %v900
        %926 = vmatprep.subr.bf16.mxu0 0
        %927 = vmatpush1.bf16.msra.mxu0 %v899
        %928 = vmatprep.subr.bf16.mxu0 0
        %929 = vmatpush2.bf16.msra.mxu0 0
        %930 = vmatprep.subr.bf16.mxu0 0
        %931 = vmatpush2.bf16.msra.mxu0 0
        %932 = vmatprep.subr.bf16.mxu0 0
        %933 = vmatpush2.bf16.msra.mxu0 0
        %934 = vmatprep.subr.bf16.mxu0 0
        %935 = vmatpush2.bf16.msra.mxu0 0
        %936 = vmatprep.subr.bf16.mxu0 0
        %937 = vmatpush2.bf16.msra.mxu0 0
        %938 = vmatprep.subr.bf16.mxu0 0
        %939 = vmatpush2.bf16.msra.mxu0 0
        %940 = vmatprep.subr.bf16.mxu0 0
        %941 = vmatpush2.bf16.msra.mxu0 0
        %942 = vmatprep.subr.bf16.mxu0 0
        %943 = vmatpush2.bf16.msra.mxu0 0
        %944 = vmatprep.mubr.bf16.mxu0 0
        %945 = vmatmul.mubr.bf16.gmra.mxu0 %v904
        %v946 = vpop.f32.mrf.mxu0
        %v947 = vadd.f32 %v889, %v946
        %v948 = vpop.f32.mrf.mxu0
        %v949 = vpop.f32.mrf.mxu0
        %v950 = vadd.f32 %v889, %v949
        %v951 = vpop.f32.mrf.mxu0
        %952 = vmatprep.mubr.bf16.mxu0 0
        %953 = vmatmul.mubr.bf16.gmra.mxu0 %v907
        %v954 = vpop.f32.mrf.mxu0
        %v955 = vadd.f32 %v889, %v954
        %v956 = vpop.f32.mrf.mxu0
        %v957 = vpop.f32.mrf.mxu0
        %v958 = vadd.f32 %v889, %v957
        %v959 = vpop.f32.mrf.mxu0
        %960 = vmatprep.mubr.bf16.mxu0 0
        %961 = vmatmul.mubr.bf16.gmra.mxu0 %v910
        %v962 = vpop.f32.mrf.mxu0
        %v963 = vadd.f32 %v889, %v962
        %v964 = vpop.f32.mrf.mxu0
        %v965 = vpop.f32.mrf.mxu0
        %v966 = vadd.f32 %v889, %v965
        %v967 = vpop.f32.mrf.mxu0
        %968 = vdwg.mxu0
        %v969 = vpack.c.bf16 %v873, %v869
        %v970 = vpack.c.bf16 %v875, %v871
        %v971 = vld [vmem:[#allocation2] sm:$0xf]
        %v972 = vld [vmem:[#allocation2 + $0x4] sm:$0xf]
        %v973 = vld [vmem:[#allocation2 + $0x8] sm:$0xf]
        %v974 = vld [vmem:[#allocation2 + $0xc] sm:$0xf]
        %v975 = vld [vmem:[#allocation2 + $0x10] sm:$0xf]
        %v976 = vld [vmem:[#allocation2 + $0x14] sm:$0xf]
        %v983 = vunpack.c.l.b16 %v971
        %v984 = vunpack.c.l.b16 %v972
        %v985 = vunpack.c.l.b16 %v973
        %v986 = vunpack.c.l.b16 %v974
        %v987 = vunpack.c.l.b16 %v975
        %v988 = vunpack.c.l.b16 %v976
        %v989 = vpack.c.b16 %v984, %v983
        %v990 = vpack.c.b16 %v986, %v985
        %v991 = vpack.c.b16 %v988, %v987
        %993 = vrot.lane.b32.xlu0 %v969, 96
        %v994 = vpop.permute.xlu0 %993
        %vm996 = vcmask 130048
        %v998 = vsel %vm996, %v989, 0
        %v1001 = vsel %vm996, %v990, 0
        %v1004 = vsel %vm996, %v991, 0
        %1006 = vmatprep.subr.bf16.mxu0 0
        %1007 = vmatpush1.bf16.msra.mxu0 0
        %1008 = vmatprep.subr.bf16.mxu0 0
        %1009 = vmatpush1.bf16.msra.mxu0 0
        %1010 = vmatprep.subr.bf16.mxu0 0
        %1011 = vmatpush1.bf16.msra.mxu0 0
        %1012 = vmatprep.subr.bf16.mxu0 0
        %1013 = vmatpush1.bf16.msra.mxu0 0
        %1014 = vmatprep.subr.bf16.mxu0 0
        %1015 = vmatpush1.bf16.msra.mxu0 0
        %1016 = vmatprep.subr.bf16.mxu0 0
        %1017 = vmatpush1.bf16.msra.mxu0 0
        %1018 = vmatprep.subr.bf16.mxu0 0
        %1019 = vmatpush1.bf16.msra.mxu0 0
        %1020 = vmatprep.subr.bf16.mxu0 0
        %1021 = vmatpush1.bf16.msra.mxu0 %v994
        %1022 = vmatprep.subr.bf16.mxu0 0
        %1023 = vmatpush2.bf16.msra.mxu0 0
        %1024 = vmatprep.subr.bf16.mxu0 0
        %1025 = vmatpush2.bf16.msra.mxu0 0
        %1026 = vmatprep.subr.bf16.mxu0 0
        %1027 = vmatpush2.bf16.msra.mxu0 0
        %1028 = vmatprep.subr.bf16.mxu0 0
        %1029 = vmatpush2.bf16.msra.mxu0 0
        %1030 = vmatprep.subr.bf16.mxu0 0
        %1031 = vmatpush2.bf16.msra.mxu0 0
        %1032 = vmatprep.subr.bf16.mxu0 0
        %1033 = vmatpush2.bf16.msra.mxu0 0
        %1034 = vmatprep.subr.bf16.mxu0 0
        %1035 = vmatpush2.bf16.msra.mxu0 0
        %1036 = vmatprep.subr.bf16.mxu0 0
        %1037 = vmatpush2.bf16.msra.mxu0 0
        %1038 = vmatprep.mubr.bf16.mxu0 0
        %1039 = vmatmul.mubr.bf16.gmra.mxu0 %v998
        %v1040 = vpop.f32.mrf.mxu0
        %v1041 = vadd.f32 0.0, %v1040
        %v1042 = vpop.f32.mrf.mxu0
        %v1043 = vpop.f32.mrf.mxu0
        %v1044 = vadd.f32 0.0, %v1043
        %v1045 = vpop.f32.mrf.mxu0
        %1046 = vmatprep.mubr.bf16.mxu0 0
        %1047 = vmatmul.mubr.bf16.gmra.mxu0 %v1001
        %v1048 = vpop.f32.mrf.mxu0
        %v1049 = vadd.f32 0.0, %v1048
        %v1050 = vpop.f32.mrf.mxu0
        %v1051 = vpop.f32.mrf.mxu0
        %v1052 = vadd.f32 0.0, %v1051
        %v1053 = vpop.f32.mrf.mxu0
        %1054 = vmatprep.mubr.bf16.mxu0 0
        %1055 = vmatmul.mubr.bf16.gmra.mxu0 %v1004
        %v1056 = vpop.f32.mrf.mxu0
        %v1057 = vadd.f32 0.0, %v1056
        %v1058 = vpop.f32.mrf.mxu0
        %v1059 = vpop.f32.mrf.mxu0
        %v1060 = vadd.f32 0.0, %v1059
        %v1061 = vpop.f32.mrf.mxu0
        %1062 = vdwg.mxu0
        %v1063 = vld [vmem:[#allocation3] sm:$0xf]
        %v1064 = vld [vmem:[#allocation3 + $0x4] sm:$0xf]
        %v1065 = vld [vmem:[#allocation3 + $0x8] sm:$0xf]
        %v1066 = vld [vmem:[#allocation3 + $0xc] sm:$0xf]
        %v1067 = vld [vmem:[#allocation3 + $0x10] sm:$0xf]
        %v1068 = vld [vmem:[#allocation3 + $0x14] sm:$0xf]
        %v1075 = vunpack.c.l.b16 %v1063
        %v1076 = vunpack.c.l.b16 %v1064
        %v1077 = vunpack.c.l.b16 %v1065
        %v1078 = vunpack.c.l.b16 %v1066
        %v1079 = vunpack.c.l.b16 %v1067
        %v1080 = vunpack.c.l.b16 %v1068
        %v1081 = vpack.c.b16 %v1076, %v1075
        %v1082 = vpack.c.b16 %v1078, %v1077
        %v1083 = vpack.c.b16 %v1080, %v1079
        %1085 = vrot.lane.b32.xlu0 %v969, 64
        %v1086 = vpop.permute.xlu0 %1085
        %1087 = vrot.lane.b32.xlu0 %v970, 64
        %v1088 = vpop.permute.xlu0 %1087
        %vm1089 = vcmask 523264
        %v1090 = vsel %vm1089, %v1086, %v1088
        %v1093 = vsel %vm996, %v1081, 0
        %v1096 = vsel %vm996, %v1082, 0
        %v1099 = vsel %vm996, %v1083, 0
        %1101 = vmatprep.subr.bf16.mxu0 0
        %1102 = vmatpush1.bf16.msra.mxu0 0
        %1103 = vmatprep.subr.bf16.mxu0 0
        %1104 = vmatpush1.bf16.msra.mxu0 0
        %1105 = vmatprep.subr.bf16.mxu0 0
        %1106 = vmatpush1.bf16.msra.mxu0 0
        %1107 = vmatprep.subr.bf16.mxu0 0
        %1108 = vmatpush1.bf16.msra.mxu0 0
        %1109 = vmatprep.subr.bf16.mxu0 0
        %1110 = vmatpush1.bf16.msra.mxu0 0
        %1111 = vmatprep.subr.bf16.mxu0 0
        %1112 = vmatpush1.bf16.msra.mxu0 0
        %1113 = vmatprep.subr.bf16.mxu0 0
        %1114 = vmatpush1.bf16.msra.mxu0 0
        %1115 = vmatprep.subr.bf16.mxu0 0
        %1116 = vmatpush1.bf16.msra.mxu0 %v1090
        %1117 = vmatprep.subr.bf16.mxu0 0
        %1118 = vmatpush2.bf16.msra.mxu0 0
        %1119 = vmatprep.subr.bf16.mxu0 0
        %1120 = vmatpush2.bf16.msra.mxu0 0
        %1121 = vmatprep.subr.bf16.mxu0 0
        %1122 = vmatpush2.bf16.msra.mxu0 0
        %1123 = vmatprep.subr.bf16.mxu0 0
        %1124 = vmatpush2.bf16.msra.mxu0 0
        %1125 = vmatprep.subr.bf16.mxu0 0
        %1126 = vmatpush2.bf16.msra.mxu0 0
        %1127 = vmatprep.subr.bf16.mxu0 0
        %1128 = vmatpush2.bf16.msra.mxu0 0
        %1129 = vmatprep.subr.bf16.mxu0 0
        %1130 = vmatpush2.bf16.msra.mxu0 0
        %1131 = vmatprep.subr.bf16.mxu0 0
        %1132 = vmatpush2.bf16.msra.mxu0 0
        %1133 = vmatprep.mubr.bf16.mxu0 0
        %1134 = vmatmul.mubr.bf16.gmra.mxu0 %v1093
        %v1135 = vpop.f32.mrf.mxu0
        %v1136 = vadd.f32 0.0, %v1135
        %v1137 = vpop.f32.mrf.mxu0
        %v1138 = vpop.f32.mrf.mxu0
        %v1139 = vadd.f32 0.0, %v1138
        %v1140 = vpop.f32.mrf.mxu0
        %1141 = vmatprep.mubr.bf16.mxu0 0
        %1142 = vmatmul.mubr.bf16.gmra.mxu0 %v1096
        %v1143 = vpop.f32.mrf.mxu0
        %v1144 = vadd.f32 0.0, %v1143
        %v1145 = vpop.f32.mrf.mxu0
        %v1146 = vpop.f32.mrf.mxu0
        %v1147 = vadd.f32 0.0, %v1146
        %v1148 = vpop.f32.mrf.mxu0
        %1149 = vmatprep.mubr.bf16.mxu0 0
        %1150 = vmatmul.mubr.bf16.gmra.mxu0 %v1099
        %v1151 = vpop.f32.mrf.mxu0
        %v1152 = vadd.f32 0.0, %v1151
        %v1153 = vpop.f32.mrf.mxu0
        %v1154 = vpop.f32.mrf.mxu0
        %v1155 = vadd.f32 0.0, %v1154
        %v1156 = vpop.f32.mrf.mxu0
        %1157 = vdwg.mxu0
        %v1158 = vld [vmem:[%s582] sm:$0x1]
        %v1159 = vld [vmem:[%s585] sm:$0x1]
        %1166 = vrot.lane.b32.xlu0 %v1041, 96
        %v1167 = vpop.permute.xlu0 %1166
        %1168 = vrot.lane.b32.xlu0 %v1044, 96
        %v1169 = vpop.permute.xlu0 %1168
        %1170 = vrot.lane.b32.xlu0 %v1049, 96
        %v1171 = vpop.permute.xlu0 %1170
        %1172 = vrot.lane.b32.xlu0 %v1052, 96
        %v1173 = vpop.permute.xlu0 %1172
        %1174 = vrot.lane.b32.xlu0 %v1057, 96
        %v1175 = vpop.permute.xlu0 %1174
        %1176 = vrot.lane.b32.xlu0 %v1060, 96
        %v1177 = vpop.permute.xlu0 %1176
        %v1184 = vadd.f32 %v947, %v1167
        %v1185 = vadd.f32 %v950, %v1169
        %v1186 = vadd.f32 %v955, %v1171
        %v1187 = vadd.f32 %v958, %v1173
        %v1188 = vadd.f32 %v963, %v1175
        %v1189 = vadd.f32 %v966, %v1177
        %1196 = vrot.lane.b32.xlu0 %v1136, 96
        %v1197 = vpop.permute.xlu0 %1196
        %1198 = vrot.lane.b32.xlu0 %v1139, 96
        %v1199 = vpop.permute.xlu0 %1198
        %1200 = vrot.lane.b32.xlu0 %v1144, 96
        %v1201 = vpop.permute.xlu0 %1200
        %1202 = vrot.lane.b32.xlu0 %v1147, 96
        %v1203 = vpop.permute.xlu0 %1202
        %1204 = vrot.lane.b32.xlu0 %v1152, 96
        %v1205 = vpop.permute.xlu0 %1204
        %1206 = vrot.lane.b32.xlu0 %v1155, 96
        %v1207 = vpop.permute.xlu0 %1206
        %v1214 = vadd.f32 %v1184, %v1197
        %v1215 = vadd.f32 %v1185, %v1199
        %v1216 = vadd.f32 %v1186, %v1201
        %v1217 = vadd.f32 %v1187, %v1203
        %v1218 = vadd.f32 %v1188, %v1205
        %v1219 = vadd.f32 %v1189, %v1207
        %v1220 = vsel %vm830, %v1214, 0.0
        %1221 = vadd.xlane.f32.xlu0 %v1220
        %v1222 = vpop.xlane.xlu0 %1221
        %v1223 = vsel %vm830, %v1215, 0.0
        %1224 = vadd.xlane.f32.xlu0 %v1223
        %v1225 = vpop.xlane.xlu0 %1224
        %v1226 = vsel %vm830, %v1216, 0.0
        %1227 = vadd.xlane.f32.xlu0 %v1226
        %v1228 = vpop.xlane.xlu0 %1227
        %v1229 = vsel %vm830, %v1217, 0.0
        %1230 = vadd.xlane.f32.xlu0 %v1229
        %v1231 = vpop.xlane.xlu0 %1230
        %v1232 = vsel %vm830, %v1218, 0.0
        %1233 = vadd.xlane.f32.xlu0 %v1232
        %v1234 = vpop.xlane.xlu0 %1233
        %v1235 = vsel %vm830, %v1219, 0.0
        %1236 = vadd.xlane.f32.xlu0 %v1235
        %v1237 = vpop.xlane.xlu0 %1236
        %v1238 = vrcp.pop 32.0
        %v1239 = vmul.f32 %v1222, %v1238
        %v1240 = vmul.f32 %v1225, %v1238
        %v1241 = vmul.f32 %v1228, %v1238
        %v1242 = vmul.f32 %v1231, %v1238
        %v1243 = vmul.f32 %v1234, %v1238
        %v1244 = vmul.f32 %v1237, %v1238
        %v1245 = vsub.f32 %v1214, %v1239
        %v1246 = vsub.f32 %v1215, %v1240
        %v1247 = vsub.f32 %v1216, %v1241
        %v1248 = vsub.f32 %v1217, %v1242
        %v1249 = vsub.f32 %v1218, %v1243
        %v1250 = vsub.f32 %v1219, %v1244
        %v1251 = vmul.f32 %v1245, %v1245
        %v1252 = vmul.f32 %v1246, %v1246
        %v1253 = vmul.f32 %v1247, %v1247
        %v1254 = vmul.f32 %v1248, %v1248
        %v1255 = vmul.f32 %v1249, %v1249
        %v1256 = vmul.f32 %v1250, %v1250
        %v1257 = vsel %vm830, %v1251, 0.0
        %1258 = vadd.xlane.f32.xlu0 %v1257
        %v1259 = vpop.xlane.xlu0 %1258
        %v1260 = vsel %vm830, %v1252, 0.0
        %1261 = vadd.xlane.f32.xlu0 %v1260
        %v1262 = vpop.xlane.xlu0 %1261
        %v1263 = vsel %vm830, %v1253, 0.0
        %1264 = vadd.xlane.f32.xlu0 %v1263
        %v1265 = vpop.xlane.xlu0 %1264
        %v1266 = vsel %vm830, %v1254, 0.0
        %1267 = vadd.xlane.f32.xlu0 %v1266
        %v1268 = vpop.xlane.xlu0 %1267
        %v1269 = vsel %vm830, %v1255, 0.0
        %1270 = vadd.xlane.f32.xlu0 %v1269
        %v1271 = vpop.xlane.xlu0 %1270
        %v1272 = vsel %vm830, %v1256, 0.0
        %1273 = vadd.xlane.f32.xlu0 %v1272
        %v1274 = vpop.xlane.xlu0 %1273
        %v1275 = vmul.f32 %v1259, %v1238
        %v1276 = vmul.f32 %v1262, %v1238
        %v1277 = vmul.f32 %v1265, %v1238
        %v1278 = vmul.f32 %v1268, %v1238
        %v1279 = vmul.f32 %v1271, %v1238
        %v1280 = vmul.f32 %v1274, %v1238
        %v1281 = vadd.f32 %v1275, 1e-05
        %v1282 = vadd.f32 %v1276, 1e-05
        %v1283 = vadd.f32 %v1277, 1e-05
        %v1284 = vadd.f32 %v1278, 1e-05
        %v1285 = vadd.f32 %v1279, 1e-05
        %v1286 = vadd.f32 %v1280, 1e-05
        %v1287 = vrsqrt.pop %v1281
        %v1288 = vrsqrt.pop %v1282
        %v1289 = vrsqrt.pop %v1283
        %v1290 = vrsqrt.pop %v1284
        %v1291 = vrsqrt.pop %v1285
        %v1292 = vrsqrt.pop %v1286
        %v1293 = vmul.f32 %v1245, %v1287
        %v1294 = vmul.f32 %v1246, %v1288
        %v1295 = vmul.f32 %v1247, %v1289
        %v1296 = vmul.f32 %v1248, %v1290
        %v1297 = vmul.f32 %v1249, %v1291
        %v1298 = vmul.f32 %v1250, %v1292
        %v1300 = vlaneseq
        %v1301 = vshrl.u32 %v1300, 7
        %v1302 = vsub.s32 0, %v1301
        %v1303 = vrot.slane %v1158, %v1302
        %v1305 = vmul.f32 %v1293, %v1303
        %v1306 = vmul.f32 %v1294, %v1303
        %v1307 = vmul.f32 %v1295, %v1303
        %v1308 = vmul.f32 %v1296, %v1303
        %v1309 = vmul.f32 %v1297, %v1303
        %v1310 = vmul.f32 %v1298, %v1303
        %v1312 = vlaneseq
        %v1313 = vshrl.u32 %v1312, 7
        %v1314 = vsub.s32 0, %v1313
        %v1315 = vrot.slane %v1159, %v1314
        %v1317 = vadd.f32 %v1305, %v1315
        %v1318 = vadd.f32 %v1306, %v1315
        %v1319 = vadd.f32 %v1307, %v1315
        %v1320 = vadd.f32 %v1308, %v1315
        %v1321 = vadd.f32 %v1309, %v1315
        %v1322 = vadd.f32 %v1310, %v1315
        %v1323 = vmax.f32 %v1317, 0.0
        %v1324 = vmax.f32 %v1318, 0.0
        %v1325 = vmax.f32 %v1319, 0.0
        %v1326 = vmax.f32 %v1320, 0.0
        %v1327 = vmax.f32 %v1321, 0.0
        %v1328 = vmax.f32 %v1322, 0.0
        %v1329 = vadd.f32 %v787, %v1323
        %v1330 = vadd.f32 %v788, %v1324
        %v1331 = vadd.f32 %v789, %v1325
        %v1332 = vadd.f32 %v790, %v1326
        %v1333 = vadd.f32 %v791, %v1327
        %v1334 = vadd.f32 %v792, %v1328
        %v1335 = vadd.f32 %v947, %v1136
        %v1336 = vadd.f32 %v950, %v1139
        %v1337 = vadd.f32 %v955, %v1144
        %v1338 = vadd.f32 %v958, %v1147
        %v1339 = vadd.f32 %v963, %v1152
        %v1340 = vadd.f32 %v966, %v1155
        %1341 = vrot.lane.b32.xlu0 %v1041, 64
        %v1342 = vpop.permute.xlu0 %1341
        %1343 = vrot.lane.b32.xlu0 %v1044, 64
        %v1344 = vpop.permute.xlu0 %1343
        %1345 = vrot.lane.b32.xlu0 %v1049, 64
        %v1346 = vpop.permute.xlu0 %1345
        %1347 = vrot.lane.b32.xlu0 %v1052, 64
        %v1348 = vpop.permute.xlu0 %1347
        %1349 = vrot.lane.b32.xlu0 %v1057, 64
        %v1350 = vpop.permute.xlu0 %1349
        %1351 = vrot.lane.b32.xlu0 %v1060, 64
        %v1352 = vpop.permute.xlu0 %1351
        %v1359 = vadd.f32 %v1335, %v1342
        %v1360 = vadd.f32 %v1336, %v1344
        %v1361 = vadd.f32 %v1337, %v1346
        %v1362 = vadd.f32 %v1338, %v1348
        %v1363 = vadd.f32 %v1339, %v1350
        %v1364 = vadd.f32 %v1340, %v1352
        %v1365 = vsel %vm830, %v1359, 0.0
        %1366 = vadd.xlane.f32.xlu0 %v1365
        %v1367 = vpop.xlane.xlu0 %1366
        %v1368 = vsel %vm830, %v1360, 0.0
        %1369 = vadd.xlane.f32.xlu0 %v1368
        %v1370 = vpop.xlane.xlu0 %1369
        %v1371 = vsel %vm830, %v1361, 0.0
        %1372 = vadd.xlane.f32.xlu0 %v1371
        %v1373 = vpop.xlane.xlu0 %1372
        %v1374 = vsel %vm830, %v1362, 0.0
        %1375 = vadd.xlane.f32.xlu0 %v1374
        %v1376 = vpop.xlane.xlu0 %1375
        %v1377 = vsel %vm830, %v1363, 0.0
        %1378 = vadd.xlane.f32.xlu0 %v1377
        %v1379 = vpop.xlane.xlu0 %1378
        %v1380 = vsel %vm830, %v1364, 0.0
        %1381 = vadd.xlane.f32.xlu0 %v1380
        %v1382 = vpop.xlane.xlu0 %1381
        %v1383 = vmul.f32 %v1367, %v1238
        %v1384 = vmul.f32 %v1370, %v1238
        %v1385 = vmul.f32 %v1373, %v1238
        %v1386 = vmul.f32 %v1376, %v1238
        %v1387 = vmul.f32 %v1379, %v1238
        %v1388 = vmul.f32 %v1382, %v1238
        %v1389 = vsub.f32 %v1359, %v1383
        %v1390 = vsub.f32 %v1360, %v1384
        %v1391 = vsub.f32 %v1361, %v1385
        %v1392 = vsub.f32 %v1362, %v1386
        %v1393 = vsub.f32 %v1363, %v1387
        %v1394 = vsub.f32 %v1364, %v1388
        %v1395 = vmul.f32 %v1389, %v1389
        %v1396 = vmul.f32 %v1390, %v1390
        %v1397 = vmul.f32 %v1391, %v1391
        %v1398 = vmul.f32 %v1392, %v1392
        %v1399 = vmul.f32 %v1393, %v1393
        %v1400 = vmul.f32 %v1394, %v1394
        %v1401 = vsel %vm830, %v1395, 0.0
        %1402 = vadd.xlane.f32.xlu0 %v1401
        %v1403 = vpop.xlane.xlu0 %1402
        %v1404 = vsel %vm830, %v1396, 0.0
        %1405 = vadd.xlane.f32.xlu0 %v1404
        %v1406 = vpop.xlane.xlu0 %1405
        %v1407 = vsel %vm830, %v1397, 0.0
        %1408 = vadd.xlane.f32.xlu0 %v1407
        %v1409 = vpop.xlane.xlu0 %1408
        %v1410 = vsel %vm830, %v1398, 0.0
        %1411 = vadd.xlane.f32.xlu0 %v1410
        %v1412 = vpop.xlane.xlu0 %1411
        %v1413 = vsel %vm830, %v1399, 0.0
        %1414 = vadd.xlane.f32.xlu0 %v1413
        %v1415 = vpop.xlane.xlu0 %1414
        %v1416 = vsel %vm830, %v1400, 0.0
        %1417 = vadd.xlane.f32.xlu0 %v1416
        %v1418 = vpop.xlane.xlu0 %1417
        %v1419 = vmul.f32 %v1403, %v1238
        %v1420 = vmul.f32 %v1406, %v1238
        %v1421 = vmul.f32 %v1409, %v1238
        %v1422 = vmul.f32 %v1412, %v1238
        %v1423 = vmul.f32 %v1415, %v1238
        %v1424 = vmul.f32 %v1418, %v1238
        %v1425 = vadd.f32 %v1419, 1e-05
        %v1426 = vadd.f32 %v1420, 1e-05
        %v1427 = vadd.f32 %v1421, 1e-05
        %v1428 = vadd.f32 %v1422, 1e-05
        %v1429 = vadd.f32 %v1423, 1e-05
        %v1430 = vadd.f32 %v1424, 1e-05
        %v1431 = vrsqrt.pop %v1425
        %v1432 = vrsqrt.pop %v1426
        %v1433 = vrsqrt.pop %v1427
        %v1434 = vrsqrt.pop %v1428
        %v1435 = vrsqrt.pop %v1429
        %v1436 = vrsqrt.pop %v1430
        %v1437 = vmul.f32 %v1389, %v1431
        %v1438 = vmul.f32 %v1390, %v1432
        %v1439 = vmul.f32 %v1391, %v1433
        %v1440 = vmul.f32 %v1392, %v1434
        %v1441 = vmul.f32 %v1393, %v1435
        %v1442 = vmul.f32 %v1394, %v1436
        %v1443 = vmul.f32 %v1437, %v1303
        %v1444 = vmul.f32 %v1438, %v1303
        %v1445 = vmul.f32 %v1439, %v1303
        %v1446 = vmul.f32 %v1440, %v1303
        %v1447 = vmul.f32 %v1441, %v1303
        %v1448 = vmul.f32 %v1442, %v1303
        %v1449 = vadd.f32 %v1443, %v1315
        %v1450 = vadd.f32 %v1444, %v1315
        %v1451 = vadd.f32 %v1445, %v1315
        %v1452 = vadd.f32 %v1446, %v1315
        %v1453 = vadd.f32 %v1447, %v1315
        %v1454 = vadd.f32 %v1448, %v1315
        %v1455 = vmax.f32 %v1449, 0.0
        %v1456 = vmax.f32 %v1450, 0.0
        %v1457 = vmax.f32 %v1451, 0.0
        %v1458 = vmax.f32 %v1452, 0.0
        %v1459 = vmax.f32 %v1453, 0.0
        %v1460 = vmax.f32 %v1454, 0.0
        %v1461 = vadd.f32 %v787, %v1455
        %v1462 = vadd.f32 %v788, %v1456
        %v1463 = vadd.f32 %v789, %v1457
        %v1464 = vadd.f32 %v790, %v1458
        %v1465 = vadd.f32 %v791, %v1459
        %v1466 = vadd.f32 %v792, %v1460
        %v1467 = vxor.u32 %v1329, 2147483648
        %v1468 = vxor.u32 %v1330, 2147483648
        %v1469 = vxor.u32 %v1331, 2147483648
        %v1470 = vxor.u32 %v1332, 2147483648
        %v1471 = vxor.u32 %v1333, 2147483648
        %v1472 = vxor.u32 %v1334, 2147483648
        %v1473 = vmul.f32 %v1467, 1.442695
        %v1474 = vpow.pop %v1473
        %v1475 = vmul.f32 %v1468, 1.442695
        %v1476 = vpow.pop %v1475
        %v1477 = vmul.f32 %v1469, 1.442695
        %v1478 = vpow.pop %v1477
        %v1479 = vmul.f32 %v1470, 1.442695
        %v1480 = vpow.pop %v1479
        %v1481 = vmul.f32 %v1471, 1.442695
        %v1482 = vpow.pop %v1481
        %v1483 = vmul.f32 %v1472, 1.442695
        %v1484 = vpow.pop %v1483
        %v1485 = vadd.f32 %v1474, 1.0
        %v1486 = vadd.f32 %v1476, 1.0
        %v1487 = vadd.f32 %v1478, 1.0
        %v1488 = vadd.f32 %v1480, 1.0
        %v1489 = vadd.f32 %v1482, 1.0
        %v1490 = vadd.f32 %v1484, 1.0
        %v1491 = vrcp.pop %v1485
        %v1492 = vmul.f32 1.0, %v1491
        %v1493 = vrcp.pop %v1486
        %v1494 = vmul.f32 1.0, %v1493
        %v1495 = vrcp.pop %v1487
        %v1496 = vmul.f32 1.0, %v1495
        %v1497 = vrcp.pop %v1488
        %v1498 = vmul.f32 1.0, %v1497
        %v1499 = vrcp.pop %v1489
        %v1500 = vmul.f32 1.0, %v1499
        %v1501 = vrcp.pop %v1490
        %v1502 = vmul.f32 1.0, %v1501
        %v1503 = vxor.u32 %v1461, 2147483648
        %v1504 = vxor.u32 %v1462, 2147483648
        %v1505 = vxor.u32 %v1463, 2147483648
        %v1506 = vxor.u32 %v1464, 2147483648
        %v1507 = vxor.u32 %v1465, 2147483648
        %v1508 = vxor.u32 %v1466, 2147483648
        %v1509 = vmul.f32 %v1503, 1.442695
        %v1510 = vpow.pop %v1509
        %v1511 = vmul.f32 %v1504, 1.442695
        %v1512 = vpow.pop %v1511
        %v1513 = vmul.f32 %v1505, 1.442695
        %v1514 = vpow.pop %v1513
        %v1515 = vmul.f32 %v1506, 1.442695
        %v1516 = vpow.pop %v1515
        %v1517 = vmul.f32 %v1507, 1.442695
        %v1518 = vpow.pop %v1517
        %v1519 = vmul.f32 %v1508, 1.442695
        %v1520 = vpow.pop %v1519
        %v1521 = vadd.f32 %v1510, 1.0
        %v1522 = vadd.f32 %v1512, 1.0
        %v1523 = vadd.f32 %v1514, 1.0
        %v1524 = vadd.f32 %v1516, 1.0
        %v1525 = vadd.f32 %v1518, 1.0
        %v1526 = vadd.f32 %v1520, 1.0
        %v1527 = vrcp.pop %v1521
        %v1528 = vmul.f32 1.0, %v1527
        %v1529 = vrcp.pop %v1522
        %v1530 = vmul.f32 1.0, %v1529
        %v1531 = vrcp.pop %v1523
        %v1532 = vmul.f32 1.0, %v1531
        %v1533 = vrcp.pop %v1524
        %v1534 = vmul.f32 1.0, %v1533
        %v1535 = vrcp.pop %v1525
        %v1536 = vmul.f32 1.0, %v1535
        %v1537 = vrcp.pop %v1526
        %v1538 = vmul.f32 1.0, %v1537
        %v1539 = vmul.f32 %v1041, %v1492
        %v1540 = vmul.f32 %v1044, %v1494
        %v1541 = vmul.f32 %v1049, %v1496
        %v1542 = vmul.f32 %v1052, %v1498
        %v1543 = vmul.f32 %v1057, %v1500
        %v1544 = vmul.f32 %v1060, %v1502
        %1551 = vrot.lane.b32.xlu0 %v1492, 32
        %v1552 = vpop.permute.xlu0 %1551
        %1553 = vrot.lane.b32.xlu0 %v1494, 32
        %v1554 = vpop.permute.xlu0 %1553
        %1555 = vrot.lane.b32.xlu0 %v1496, 32
        %v1556 = vpop.permute.xlu0 %1555
        %1557 = vrot.lane.b32.xlu0 %v1498, 32
        %v1558 = vpop.permute.xlu0 %1557
        %1559 = vrot.lane.b32.xlu0 %v1500, 32
        %v1560 = vpop.permute.xlu0 %1559
        %1561 = vrot.lane.b32.xlu0 %v1502, 32
        %v1562 = vpop.permute.xlu0 %1561
        %v1569 = vsel %vm830, %v1539, %v1552
        %v1570 = vsel %vm830, %v1540, %v1554
        %v1571 = vsel %vm830, %v1541, %v1556
        %v1572 = vsel %vm830, %v1542, %v1558
        %v1573 = vsel %vm830, %v1543, %v1560
        %v1574 = vsel %vm830, %v1544, %v1562
        %v1575 = vpack.c.bf16 %v1570, %v1569
        %v1576 = vpack.c.bf16 %v1572, %v1571
        %v1577 = vpack.c.bf16 %v1574, %v1573
        %1584 = vrot.lane.b32.xlu0 %v1528, 64
        %v1585 = vpop.permute.xlu0 %1584
        %1586 = vrot.lane.b32.xlu0 %v1530, 64
        %v1587 = vpop.permute.xlu0 %1586
        %1588 = vrot.lane.b32.xlu0 %v1532, 64
        %v1589 = vpop.permute.xlu0 %1588
        %1590 = vrot.lane.b32.xlu0 %v1534, 64
        %v1591 = vpop.permute.xlu0 %1590
        %1592 = vrot.lane.b32.xlu0 %v1536, 64
        %v1593 = vpop.permute.xlu0 %1592
        %1594 = vrot.lane.b32.xlu0 %v1538, 64
        %v1595 = vpop.permute.xlu0 %1594
        %v1602 = vmul.f32 %v1136, %v1585
        %v1603 = vmul.f32 %v1139, %v1587
        %v1604 = vmul.f32 %v1144, %v1589
        %v1605 = vmul.f32 %v1147, %v1591
        %v1606 = vmul.f32 %v1152, %v1593
        %v1607 = vmul.f32 %v1155, %v1595
        %1614 = vrot.lane.b32.xlu0 %v1602, 64
        %v1615 = vpop.permute.xlu0 %1614
        %1616 = vrot.lane.b32.xlu0 %v1603, 64
        %v1617 = vpop.permute.xlu0 %1616
        %1618 = vrot.lane.b32.xlu0 %v1604, 64
        %v1619 = vpop.permute.xlu0 %1618
        %1620 = vrot.lane.b32.xlu0 %v1605, 64
        %v1621 = vpop.permute.xlu0 %1620
        %1622 = vrot.lane.b32.xlu0 %v1606, 64
        %v1623 = vpop.permute.xlu0 %1622
        %1624 = vrot.lane.b32.xlu0 %v1607, 64
        %v1625 = vpop.permute.xlu0 %1624
        %1632 = vrot.lane.b32.xlu0 %v1528, 32
        %v1633 = vpop.permute.xlu0 %1632
        %1634 = vrot.lane.b32.xlu0 %v1530, 32
        %v1635 = vpop.permute.xlu0 %1634
        %1636 = vrot.lane.b32.xlu0 %v1532, 32
        %v1637 = vpop.permute.xlu0 %1636
        %1638 = vrot.lane.b32.xlu0 %v1534, 32
        %v1639 = vpop.permute.xlu0 %1638
        %1640 = vrot.lane.b32.xlu0 %v1536, 32
        %v1641 = vpop.permute.xlu0 %1640
        %1642 = vrot.lane.b32.xlu0 %v1538, 32
        %v1643 = vpop.permute.xlu0 %1642
        %v1650 = vsel %vm830, %v1615, %v1633
        %v1651 = vsel %vm830, %v1617, %v1635
        %v1652 = vsel %vm830, %v1619, %v1637
        %v1653 = vsel %vm830, %v1621, %v1639
        %v1654 = vsel %vm830, %v1623, %v1641
        %v1655 = vsel %vm830, %v1625, %v1643
        %v1656 = vpack.c.bf16 %v1651, %v1650
        %v1657 = vpack.c.bf16 %v1653, %v1652
        %v1658 = vpack.c.bf16 %v1655, %v1654
        %v1659 = vld [vmem:[#allocation5] sm:$0xf]
        %v1660 = vld [vmem:[#allocation5 + $0x4] sm:$0xf]
        %v1663 = vunpack.c.l.b16 %v1659
        %v1664 = vunpack.c.l.b16 %v1660
        %v1665 = vpack.c.b16 %v1664, %v1663
        %vm1666 = vcmask 392192
        %v1668 = vsel %vm1666, %v1665, 0
        %1670 = vmatprep.subr.bf16.mxu0 0
        %1671 = vmatpush1.bf16.msra.mxu0 0
        %1672 = vmatprep.subr.bf16.mxu0 0
        %1673 = vmatpush1.bf16.msra.mxu0 0
        %1674 = vmatprep.subr.bf16.mxu0 0
        %1675 = vmatpush1.bf16.msra.mxu0 0
        %1676 = vmatprep.subr.bf16.mxu0 0
        %1677 = vmatpush1.bf16.msra.mxu0 0
        %1678 = vmatprep.subr.bf16.mxu0 0
        %1679 = vmatpush1.bf16.msra.mxu0 0
        %1680 = vmatprep.subr.bf16.mxu0 0
        %1681 = vmatpush1.bf16.msra.mxu0 %v1577
        %1682 = vmatprep.subr.bf16.mxu0 0
        %1683 = vmatpush1.bf16.msra.mxu0 %v1576
        %1684 = vmatprep.subr.bf16.mxu0 0
        %1685 = vmatpush1.bf16.msra.mxu0 %v1575
        %1686 = vmatprep.subr.bf16.mxu0 0
        %1687 = vmatpush2.bf16.msra.mxu0 0
        %1688 = vmatprep.subr.bf16.mxu0 0
        %1689 = vmatpush2.bf16.msra.mxu0 0
        %1690 = vmatprep.subr.bf16.mxu0 0
        %1691 = vmatpush2.bf16.msra.mxu0 0
        %1692 = vmatprep.subr.bf16.mxu0 0
        %1693 = vmatpush2.bf16.msra.mxu0 0
        %1694 = vmatprep.subr.bf16.mxu0 0
        %1695 = vmatpush2.bf16.msra.mxu0 0
        %1696 = vmatprep.subr.bf16.mxu0 0
        %1697 = vmatpush2.bf16.msra.mxu0 0
        %1698 = vmatprep.subr.bf16.mxu0 0
        %1699 = vmatpush2.bf16.msra.mxu0 0
        %1700 = vmatprep.subr.bf16.mxu0 0
        %1701 = vmatpush2.bf16.msra.mxu0 0
        %1702 = vmatprep.mubr.bf16.mxu0 0
        %1703 = vmatmul.mubr.bf16.gmra.mxu0 %v1668
        %v1704 = vpop.f32.mrf.mxu0
        %v1705 = vadd.f32 0.0, %v1704
        %v1706 = vpop.f32.mrf.mxu0
        %v1707 = vpop.f32.mrf.mxu0
        %v1708 = vadd.f32 0.0, %v1707
        %v1709 = vpop.f32.mrf.mxu0
        %1710 = vdwg.mxu0
        %v1711 = vld [vmem:[#allocation4] sm:$0xf]
        %v1712 = vld [vmem:[#allocation4 + $0x4] sm:$0xf]
        %v1715 = vunpack.c.l.b16 %v1711
        %v1716 = vunpack.c.l.b16 %v1712
        %v1717 = vpack.c.b16 %v1716, %v1715
        %v1719 = vsel %vm1666, %v1717, 0
        %1721 = vmatprep.subr.bf16.mxu0 0
        %1722 = vmatpush1.bf16.msra.mxu0 0
        %1723 = vmatprep.subr.bf16.mxu0 0
        %1724 = vmatpush1.bf16.msra.mxu0 0
        %1725 = vmatprep.subr.bf16.mxu0 0
        %1726 = vmatpush1.bf16.msra.mxu0 0
        %1727 = vmatprep.subr.bf16.mxu0 0
        %1728 = vmatpush1.bf16.msra.mxu0 0
        %1729 = vmatprep.subr.bf16.mxu0 0
        %1730 = vmatpush1.bf16.msra.mxu0 0
        %1731 = vmatprep.subr.bf16.mxu0 0
        %1732 = vmatpush1.bf16.msra.mxu0 %v1658
        %1733 = vmatprep.subr.bf16.mxu0 0
        %1734 = vmatpush1.bf16.msra.mxu0 %v1657
        %1735 = vmatprep.subr.bf16.mxu0 0
        %1736 = vmatpush1.bf16.msra.mxu0 %v1656
        %1737 = vmatprep.subr.bf16.mxu0 0
        %1738 = vmatpush2.bf16.msra.mxu0 0
        %1739 = vmatprep.subr.bf16.mxu0 0
        %1740 = vmatpush2.bf16.msra.mxu0 0
        %1741 = vmatprep.subr.bf16.mxu0 0
        %1742 = vmatpush2.bf16.msra.mxu0 0
        %1743 = vmatprep.subr.bf16.mxu0 0
        %1744 = vmatpush2.bf16.msra.mxu0 0
        %1745 = vmatprep.subr.bf16.mxu0 0
        %1746 = vmatpush2.bf16.msra.mxu0 0
        %1747 = vmatprep.subr.bf16.mxu0 0
        %1748 = vmatpush2.bf16.msra.mxu0 0
        %1749 = vmatprep.subr.bf16.mxu0 0
        %1750 = vmatpush2.bf16.msra.mxu0 0
        %1751 = vmatprep.subr.bf16.mxu0 0
        %1752 = vmatpush2.bf16.msra.mxu0 0
        %1753 = vmatprep.mubr.bf16.mxu0 0
        %1754 = vmatmul.mubr.bf16.gmra.mxu0 %v1719
        %v1755 = vpop.f32.mrf.mxu0
        %v1756 = vadd.f32 0.0, %v1755
        %v1757 = vpop.f32.mrf.mxu0
        %v1758 = vpop.f32.mrf.mxu0
        %v1759 = vadd.f32 0.0, %v1758
        %v1760 = vpop.f32.mrf.mxu0
        %1761 = vdwg.mxu0
        %v1762 = vadd.f32 %v1705, 1e-06
        %v1763 = vadd.f32 %v1708, 1e-06
        %v1764 = vrcp.pop %v1762
        %v1765 = vrcp.pop %v1763
        %1768 = vrot.lane.b32.xlu0 %v1764, 96
        %v1769 = vpop.permute.xlu0 %1768
        %1770 = vrot.lane.b32.xlu0 %v1765, 96
        %v1771 = vpop.permute.xlu0 %1770
        %v1774 = vmul.f32 %v1705, %v1769
        %v1775 = vmul.f32 %v1708, %v1771
        %v1776 = vadd.f32 %v1756, 1e-06
        %v1777 = vadd.f32 %v1759, 1e-06
        %v1778 = vrcp.pop %v1776
        %v1779 = vrcp.pop %v1777
        %1782 = vrot.lane.b32.xlu0 %v1778, 96
        %v1783 = vpop.permute.xlu0 %1782
        %1784 = vrot.lane.b32.xlu0 %v1779, 96
        %v1785 = vpop.permute.xlu0 %1784
        %v1788 = vmul.f32 %v1756, %v1783
        %v1789 = vmul.f32 %v1759, %v1785
        %v1790 = vadd.f32 %v869, %v1774
        %v1791 = vadd.f32 %v873, %v1775
        %v1792 = vadd.f32 %v1790, %v1788
        %v1793 = vadd.f32 %v1791, %v1789
        %v1794 = vld [vmem:[%s576] sm:$0x1]
        %v1795 = vld [vmem:[%s579] sm:$0x1]
        %v1796 = vsel %vm830, %v1792, 0.0
        %1797 = vadd.xlane.f32.xlu0 %v1796
        %v1798 = vpop.xlane.xlu0 %1797
        %v1799 = vsel %vm830, %v1793, 0.0
        %1800 = vadd.xlane.f32.xlu0 %v1799
        %v1801 = vpop.xlane.xlu0 %1800
        %v1802 = vmul.f32 %v1798, %v1238
        %v1803 = vmul.f32 %v1801, %v1238
        %v1804 = vsub.f32 %v1792, %v1802
        %v1805 = vsub.f32 %v1793, %v1803
        %v1806 = vmul.f32 %v1804, %v1804
        %v1807 = vmul.f32 %v1805, %v1805
        %v1808 = vsel %vm830, %v1806, 0.0
        %1809 = vadd.xlane.f32.xlu0 %v1808
        %v1810 = vpop.xlane.xlu0 %1809
        %v1811 = vsel %vm830, %v1807, 0.0
        %1812 = vadd.xlane.f32.xlu0 %v1811
        %v1813 = vpop.xlane.xlu0 %1812
        %v1814 = vmul.f32 %v1810, %v1238
        %v1815 = vmul.f32 %v1813, %v1238
        %v1816 = vadd.f32 %v1814, 1e-05
        %v1817 = vadd.f32 %v1815, 1e-05
        %v1818 = vrsqrt.pop %v1816
        %v1819 = vrsqrt.pop %v1817
        %v1820 = vmul.f32 %v1804, %v1818
        %v1821 = vmul.f32 %v1805, %v1819
        %v1823 = vlaneseq
        %v1824 = vshrl.u32 %v1823, 7
        %v1825 = vsub.s32 0, %v1824
        %v1826 = vrot.slane %v1794, %v1825
        %v1828 = vmul.f32 %v1820, %v1826
        %v1829 = vmul.f32 %v1821, %v1826
        %v1831 = vlaneseq
        %v1832 = vshrl.u32 %v1831, 7
        %v1833 = vsub.s32 0, %v1832
        %v1834 = vrot.slane %v1795, %v1833
        %v1836 = vadd.f32 %v1828, %v1834
        %v1837 = vadd.f32 %v1829, %v1834
        %v1838 = vmax.f32 %v1836, 0.0
        %v1839 = vmax.f32 %v1837, 0.0
        %v1840 = vadd.f32 %v785, %v1838
        %v1841 = vadd.f32 %v786, %v1839
        %1842 = vst.msk [vmem:[#allocation6] sm:$0xff] %vm830, %v1840
        %1843 = vst.msk [vmem:[#allocation6 + $0x8] sm:$0xff] %vm830, %v1841
        %1844 = vst.msk [vmem:[%s15] sm:$0xff] %vm830, %v1329
        %1845 = vst.msk [vmem:[%s15 + $0x8] sm:$0xff] %vm830, %v1330
        %1846 = vst.msk [vmem:[%s15 + $0x10] sm:$0xff] %vm830, %v1331
        %1847 = vst.msk [vmem:[%s15 + $0x18] sm:$0xff] %vm830, %v1332
        %1848 = vst.msk [vmem:[%s15 + $0x20] sm:$0xff] %vm830, %v1333
        %1849 = vst.msk [vmem:[%s15 + $0x28] sm:$0xff] %vm830, %v1334
        // Predicated region
        $region81: #{layered_gated_gcn_pallas.1} parent=75 // pred_check
          %p1850 = pneg %p375
        $region82: #{layered_gated_gcn_pallas.1} parent=75 // pred_check_branch
          %1852 = sbr.rel (%p1850) target = $region84
        $region83: #{layered_gated_gcn_pallas.1} parent=75 // pred_region
          %s1854 = ssub.s32 256, 256
          %1855 = vsyncadd [#allocation7], %s1854
          %s1856 = sshll.u32 [#allocation6], 4
          %s1857 = int_to_ptr.vmem [resolvable:$true] %s1856
          %1862 = dma.vmem_to_hbm [thread:$0]  %s1857, 256, %s14, [#allocation7], 128, 128, 8
        $region84: #{layered_gated_gcn_pallas.1} parent=75 // pred_fallthru
          _
        // Predicated region
        $region85: #{layered_gated_gcn_pallas.1} parent=75 // pred_check
          %p1863 = pneg %p396
        $region86: #{layered_gated_gcn_pallas.1} parent=75 // pred_check_branch
          %1865 = sbr.rel (%p1863) target = $region88
        $region87: #{layered_gated_gcn_pallas.1} parent=75 // pred_region
          _
        $region88: #{layered_gated_gcn_pallas.1} parent=75 // pred_fallthru
          _
        // Predicated region
        $region89: #{layered_gated_gcn_pallas.1} parent=75 // pred_check
          %p1866 = pneg %p375
        $region90: #{layered_gated_gcn_pallas.1} parent=75 // pred_check_branch
          %1868 = sbr.rel (%p1866) target = $region92
        $region91: #{layered_gated_gcn_pallas.1} parent=75 // pred_region
          %1869 = dma.done [#allocation7], 256
        $region92: #{layered_gated_gcn_pallas.1} parent=75 // pred_fallthru
          _
        // Predicated region
        $region93: #{layered_gated_gcn_pallas.1} parent=75 // pred_check
          %p1870 = pneg %p396
        $region94: #{layered_gated_gcn_pallas.1} parent=75 // pred_check_branch
          %1872 = sbr.rel (%p1870) target = $region96
        $region95: #{layered_gated_gcn_pallas.1} parent=75 // pred_region
          _
        $region96: #{layered_gated_gcn_pallas.1} parent=75 // pred_fallthru
          _
      $region76: #{layered_gated_gcn_pallas.1} parent=5 // pred_fallthru
        _
      %p1873 = scmp.le.s32.totalorder 2, %s23
      // Predicated region
      $region97: #{layered_gated_gcn_pallas.1} parent=5 // pred_check
        %p1874 = pneg %p1873
      $region98: #{layered_gated_gcn_pallas.1} parent=5 // pred_check_branch
        %1876 = sbr.rel (%p1874) target = $region100
      $region99: #{layered_gated_gcn_pallas.1} parent=5 // pred_region
        %s1877 = ssub.s32 %s23, 2
      $region100: #{layered_gated_gcn_pallas.1} parent=5 // pred_fallthru
        _
    $region6: #{layered_gated_gcn_pallas.1} parent=1 // loop_footer
      %s27 = sadd.s32 1, %s23
    $region7: #{layered_gated_gcn_pallas.1} parent=1 // loop_footer_branch
      %22 = sbr.rel target = $region3
    $region8: #{layered_gated_gcn_pallas.1} parent=1 // loop_exit
      _
    %1878 = vsyncpa [#allocation7], 1
    %s1879 = scalar_lea.sflag [#allocation7], 1
    %1880 = vsyncpa %s1879, 1

</llo_original>
